<compile_context>
chip_gen: v6e
topology: v6e:2x2x1
jax: 0.10.0
libtpu: 0.0.40
codegen_flags: <defaults>
</compile_context>

<pallas_src>
import functools

import jax
import jax.numpy as jnp
from jax.experimental import pallas as pl
from jax.experimental.pallas import tpu as pltpu


# -------------------- batched matmul + bias (MXU, lane-dense output) --------------------
def _matmul_bias_kernel(x_ref, w_ref, b_ref, o_ref):
    o_ref[...] = (jnp.dot(x_ref[...], w_ref[...],
                          preferred_element_type=jnp.float32)
                  + b_ref[...])


def matmul_bias(x, w, b, *, tn_max=512):
    """(M, K) @ (K, N) + (1, N) -> (M, N), tiled over N (the lane dim)."""
    M, K = x.shape
    K2, N = w.shape
    assert K == K2 and b.shape == (1, N)
    tn = N
    if N > tn_max:
        tn = tn_max
        while N % tn != 0:       # fall back to a divisor that is a multiple of 128
            tn -= 128
        assert tn >= 128 and N % tn == 0
    return pl.pallas_call(
        _matmul_bias_kernel,
        out_shape=jax.ShapeDtypeStruct((M, N), jnp.float32),
        grid_spec=pltpu.PrefetchScalarGridSpec(
            num_scalar_prefetch=0,
            grid=(N // tn,),
            in_specs=[pl.BlockSpec((M, K), lambda j: (0, 0)),
                      pl.BlockSpec((K, tn), lambda j: (0, j)),
                      pl.BlockSpec((1, tn), lambda j: (0, j))],
            out_specs=pl.BlockSpec((M, tn), lambda j: (0, j))),
        compiler_params=pltpu.CompilerParams(
            dimension_semantics=("parallel",)),
    )(x, w, b)


# ------------------------- fused encoder+decoder recurrence -----------------------------
def _lstm_cell(x_gates, h, c, whh, H):
    # x_gates already contains x @ W_ih + b (hoisted out of the recurrence).
    gates = x_gates + jnp.dot(h, whh, preferred_element_type=jnp.float32)   # (B, 4H)
    i = jax.nn.sigmoid(gates[:, 0 * H:1 * H])
    f = jax.nn.sigmoid(gates[:, 1 * H:2 * H])
    g = jnp.tanh(gates[:, 2 * H:3 * H])
    o = jax.nn.sigmoid(gates[:, 3 * H:4 * H])
    c_new = f * c + i * g
    h_new = o * jnp.tanh(c_new)
    return h_new, c_new


def _seq2seq_kernel(enc_g_ref, dec_g_ref, enc_whh_ref, dec_whh_ref,
                    hseq_ref, h_sc, c_sc):
    H = h_sc.shape[-1]
    T_enc = enc_g_ref.shape[0]
    T_dec = dec_g_ref.shape[0]

    h_sc[...] = jnp.zeros_like(h_sc)
    c_sc[...] = jnp.zeros_like(c_sc)

    enc_whh = enc_whh_ref[...]          # loaded once, resident across both loops
    dec_whh = dec_whh_ref[...]

    @pl.loop(0, T_enc)
    def _(t):
        h_new, c_new = _lstm_cell(enc_g_ref[t], h_sc[...], c_sc[...], enc_whh, H)
        h_sc[...] = h_new
        c_sc[...] = c_new

    @pl.loop(0, T_dec)
    def _(t):
        h_new, c_new = _lstm_cell(dec_g_ref[t], h_sc[...], c_sc[...], dec_whh, H)
        h_sc[...] = h_new
        c_sc[...] = c_new
        hseq_ref[t] = h_new


def seq2seq_recurrence(enc_gates, dec_gates, enc_whh, dec_whh):
    T_enc, B, G = enc_gates.shape
    T_dec = dec_gates.shape[0]
    H = enc_whh.shape[0]
    assert G == 4 * H
    return pl.pallas_call(
        _seq2seq_kernel,
        out_shape=jax.ShapeDtypeStruct((T_dec, B, H), jnp.float32),
        grid_spec=pltpu.PrefetchScalarGridSpec(
            num_scalar_prefetch=0,
            grid=(1,),
            in_specs=[pl.BlockSpec((T_enc, B, 4 * H), lambda i: (0, 0, 0)),
                      pl.BlockSpec((T_dec, B, 4 * H), lambda i: (0, 0, 0)),
                      pl.BlockSpec((H, 4 * H), lambda i: (0, 0)),
                      pl.BlockSpec((H, 4 * H), lambda i: (0, 0))],
            out_specs=pl.BlockSpec((T_dec, B, H), lambda i: (0, 0, 0)),
            scratch_shapes=[pltpu.VMEM((B, H), jnp.float32),
                            pltpu.VMEM((B, H), jnp.float32)]),
        compiler_params=pltpu.CompilerParams(
            dimension_semantics=("arbitrary",)),
    )(enc_gates, dec_gates, enc_whh, dec_whh)


# ------------------------------- EncoderDecoder wrapper ---------------------------------
def encoder_decoder_forward(params, source, target, teacher_forcing_ratio=1.0):
    """source: (src_len, B) int32 token ids; target: (trg_len, B) int32 token ids."""
    del teacher_forcing_ratio  # TODO(synk): only deterministic full teacher forcing.
    T_src, B = source.shape
    T_trg = target.shape[0]
    E = params["enc_emb"].shape[1]
    H = params["enc_whh"].shape[0]
    V = params["dec_wout"].shape[1]

    # Embedding lookups (XLA gather glue around the kernels).
    src_emb = jnp.take(params["enc_emb"], source, axis=0)      # (T_src, B, E)
    trg_emb = jnp.take(params["dec_emb"], target, axis=0)      # (T_trg, B, E)

    # Hoisted batched input projections with bias folded in (lane-dense MXU matmuls).
    enc_gates = matmul_bias(src_emb.reshape(T_src * B, E),
                            params["enc_wih"], params["enc_b"]).reshape(T_src, B, 4 * H)
    dec_gates = matmul_bias(trg_emb.reshape(T_trg * B, E),
                            params["dec_wih"], params["dec_b"]).reshape(T_trg, B, 4 * H)

    # Fused encoder+decoder recurrence; only h @ W_hh stays on the serial path.
    dec_h = seq2seq_recurrence(enc_gates, dec_gates,
                               params["enc_whh"], params["dec_whh"])   # (T_trg, B, H)

    # Hoisted vocab projection over all decoder timesteps at once.
    logits = matmul_bias(dec_h.reshape(T_trg * B, H),
                         params["dec_wout"], params["dec_bout"])       # (T_trg*B, V)
    return logits.reshape(T_trg, B, V)


def init_params(key, src_vocab, trg_vocab, emb_dim, hidden_dim):
    ks = jax.random.split(key, 9)
    s = 0.1
    return {
        "enc_emb":  s * jax.random.normal(ks[0], (src_vocab, emb_dim), jnp.float32),
        "enc_wih":  s * jax.random.normal(ks[1], (emb_dim, 4 * hidden_dim), jnp.float32),
        "enc_whh":  s * jax.random.normal(ks[2], (hidden_dim, 4 * hidden_dim), jnp.float32),
        "enc_b":    s * jax.random.normal(ks[3], (1, 4 * hidden_dim), jnp.float32),
        "dec_emb":  s * jax.random.normal(ks[4], (trg_vocab, emb_dim), jnp.float32),
        "dec_wih":  s * jax.random.normal(ks[5], (emb_dim, 4 * hidden_dim), jnp.float32),
        "dec_whh":  s * jax.random.normal(ks[6], (hidden_dim, 4 * hidden_dim), jnp.float32),
        "dec_b":    s * jax.random.normal(ks[7], (1, 4 * hidden_dim), jnp.float32),
        "dec_wout": s * jax.random.normal(ks[8], (hidden_dim, trg_vocab), jnp.float32),
        "dec_bout": jnp.zeros((1, trg_vocab), jnp.float32),
    }


if __name__ == "__main__":
    # Tile-friendly small shapes: B multiple of 8, H and V multiples of 128.
    SRC_VOCAB, TRG_VOCAB = 128, 128
    EMB, HID = 32, 128
    B, SRC_LEN, TRG_LEN = 8, 8, 8

    key = jax.random.PRNGKey(0)
    pkey, skey, tkey = jax.random.split(key, 3)
    params = init_params(pkey, SRC_VOCAB, TRG_VOCAB, EMB, HID)

    source = jax.random.randint(skey, (SRC_LEN, B), 0, SRC_VOCAB, dtype=jnp.int32)
    target = jax.random.randint(tkey, (TRG_LEN, B), 0, TRG_VOCAB, dtype=jnp.int32)

    fwd = jax.jit(functools.partial(encoder_decoder_forward, teacher_forcing_ratio=1.0))
    outputs = fwd(params, source, target)
    outputs = jax.block_until_ready(outputs)

    assert outputs.shape == (TRG_LEN, B, TRG_VOCAB)
    assert bool(jnp.all(jnp.isfinite(outputs)))
    print("KERNEL_OK")
</pallas_src>

<mosaic_0001>
module attributes {stable_mosaic.version = 11 : i64} {
  func.func @_seq2seq_kernel(%arg0: i32, %arg1: memref<8x8x512xf32, #tpu.memory_space<vmem>>, %arg2: memref<8x8x512xf32, #tpu.memory_space<vmem>>, %arg3: memref<128x512xf32, #tpu.memory_space<vmem>>, %arg4: memref<128x512xf32, #tpu.memory_space<vmem>>, %arg5: memref<8x8x128xf32, #tpu.memory_space<vmem>>, %arg6: memref<8x128xf32, #tpu.memory_space<vmem>>, %arg7: memref<8x128xf32, #tpu.memory_space<vmem>>) attributes {dimension_semantics = [#tpu.dimension_semantics<arbitrary>], iteration_bounds = array<i64: 1>, scalar_prefetch = 0 : i64, scratch_operands = 2 : i64, tpu.core_type = #tpu.core_type<tc>, window_params = [{pipeline_mode = #tpu.pipeline_mode<synchronous>, transform_indices = @transform_0, window_bounds = array<i64: 8, 8, 512>}, {pipeline_mode = #tpu.pipeline_mode<synchronous>, transform_indices = @transform_1, window_bounds = array<i64: 8, 8, 512>}, {pipeline_mode = #tpu.pipeline_mode<synchronous>, transform_indices = @transform_2, window_bounds = array<i64: 128, 512>}, {pipeline_mode = #tpu.pipeline_mode<synchronous>, transform_indices = @transform_3, window_bounds = array<i64: 128, 512>}, {pipeline_mode = #tpu.pipeline_mode<synchronous>, transform_indices = @transform_4, window_bounds = array<i64: 8, 8, 128>}]} {
    %cst = arith.constant 0.000000e+00 : f32
    %0 = vector.broadcast %cst : f32 to vector<8x128xf32>
    %c0 = arith.constant 0 : index
    %c0_0 = arith.constant 0 : index
    %1 = vector.load %arg6[%c0, %c0_0] : memref<8x128xf32, #tpu.memory_space<vmem>>, vector<8x128xf32>
    tpu.vector_store %arg6[%c0, %c0_0], %0 {strides = array<i32>} : memref<8x128xf32, #tpu.memory_space<vmem>>, vector<8x128xf32>,
    %cst_1 = arith.constant 0.000000e+00 : f32
    %2 = vector.broadcast %cst_1 : f32 to vector<8x128xf32>
    %c0_2 = arith.constant 0 : index
    %c0_3 = arith.constant 0 : index
    %3 = vector.load %arg7[%c0_2, %c0_3] : memref<8x128xf32, #tpu.memory_space<vmem>>, vector<8x128xf32>
    tpu.vector_store %arg7[%c0_2, %c0_3], %2 {strides = array<i32>} : memref<8x128xf32, #tpu.memory_space<vmem>>, vector<8x128xf32>,
    %c0_4 = arith.constant 0 : index
    %c0_5 = arith.constant 0 : index
    %4 = vector.load %arg3[%c0_4, %c0_5] : memref<128x512xf32, #tpu.memory_space<vmem>>, vector<128x512xf32>
    %c0_6 = arith.constant 0 : index
    %c0_7 = arith.constant 0 : index
    %5 = vector.load %arg4[%c0_6, %c0_7] : memref<128x512xf32, #tpu.memory_space<vmem>>, vector<128x512xf32>
    %c0_i32 = arith.constant 0 : i32
    %c8_i32 = arith.constant 8 : i32
    %6 = arith.addi %c0_i32, %c8_i32 : i32
    %c1_i32 = arith.constant 1 : i32
    scf.for %arg8 = %c0_i32 to %6 step %c1_i32  : i32 {
      %c1_i32_13 = arith.constant 1 : i32
      %8 = arith.muli %arg8, %c1_i32_13 : i32
      %c0_i32_14 = arith.constant 0 : i32
      %9 = arith.addi %c0_i32_14, %8 : i32
      %10 = arith.index_cast %9 : i32 to index
      %c0_15 = arith.constant 0 : index
      %c0_16 = arith.constant 0 : index
      %11 = vector.load %arg1[%10, %c0_15, %c0_16] : memref<8x8x512xf32, #tpu.memory_space<vmem>>, vector<1x8x512xf32>
      %12 = vector.shape_cast %11 : vector<1x8x512xf32> to vector<8x512xf32>
      %c0_17 = arith.constant 0 : index
      %c0_18 = arith.constant 0 : index
      %13 = vector.load %arg6[%c0_17, %c0_18] : memref<8x128xf32, #tpu.memory_space<vmem>>, vector<8x128xf32>
      %c0_19 = arith.constant 0 : index
      %c0_20 = arith.constant 0 : index
      %14 = vector.load %arg7[%c0_19, %c0_20] : memref<8x128xf32, #tpu.memory_space<vmem>>, vector<8x128xf32>
      %cst_21 = arith.constant dense<0.000000e+00> : vector<8x512xf32>
      %15 = tpu.matmul %13, %4, %cst_21 {dimension_numbers = #tpu.dot_dimension_numbers<[1], [0], [0], [1], [0, 0, 1, 1], [], []>} : vector<8x128xf32>, vector<128x512xf32>, vector<8x512xf32> -> vector<8x512xf32>
      %16 = arith.addf %12, %15 : vector<8x512xf32>
      %17 = vector.extract_strided_slice %16 {offsets = [0, 0], sizes = [8, 128], strides = [1, 1]} : vector<8x512xf32> to vector<8x128xf32>
      %18 = arith.negf %17 : vector<8x128xf32>
      %19 = math.exp %18 : vector<8x128xf32>
      %cst_22 = arith.constant 1.000000e+00 : f32
      %20 = vector.broadcast %cst_22 : f32 to vector<8x128xf32>
      %21 = arith.addf %20, %19 : vector<8x128xf32>
      %22 = arith.divf %20, %21 : vector<8x128xf32>
      %23 = vector.extract_strided_slice %16 {offsets = [0, 128], sizes = [8, 128], strides = [1, 1]} : vector<8x512xf32> to vector<8x128xf32>
      %24 = arith.negf %23 : vector<8x128xf32>
      %25 = math.exp %24 : vector<8x128xf32>
      %cst_23 = arith.constant 1.000000e+00 : f32
      %26 = vector.broadcast %cst_23 : f32 to vector<8x128xf32>
      %27 = arith.addf %26, %25 : vector<8x128xf32>
      %28 = arith.divf %26, %27 : vector<8x128xf32>
      %29 = vector.extract_strided_slice %16 {offsets = [0, 256], sizes = [8, 128], strides = [1, 1]} : vector<8x512xf32> to vector<8x128xf32>
      %30 = math.tanh %29 : vector<8x128xf32>
      %31 = vector.extract_strided_slice %16 {offsets = [0, 384], sizes = [8, 128], strides = [1, 1]} : vector<8x512xf32> to vector<8x128xf32>
      %32 = arith.negf %31 : vector<8x128xf32>
      %33 = math.exp %32 : vector<8x128xf32>
      %cst_24 = arith.constant 1.000000e+00 : f32
      %34 = vector.broadcast %cst_24 : f32 to vector<8x128xf32>
      %35 = arith.addf %34, %33 : vector<8x128xf32>
      %36 = arith.divf %34, %35 : vector<8x128xf32>
      %37 = arith.mulf %28, %14 : vector<8x128xf32>
      %38 = arith.mulf %22, %30 : vector<8x128xf32>
      %39 = arith.addf %37, %38 : vector<8x128xf32>
      %40 = math.tanh %39 : vector<8x128xf32>
      %41 = arith.mulf %36, %40 : vector<8x128xf32>
      %c0_25 = arith.constant 0 : index
      %c0_26 = arith.constant 0 : index
      %42 = vector.load %arg6[%c0_25, %c0_26] : memref<8x128xf32, #tpu.memory_space<vmem>>, vector<8x128xf32>
      tpu.vector_store %arg6[%c0_25, %c0_26], %41 {strides = array<i32>} : memref<8x128xf32, #tpu.memory_space<vmem>>, vector<8x128xf32>,
      %c0_27 = arith.constant 0 : index
      %c0_28 = arith.constant 0 : index
      %43 = vector.load %arg7[%c0_27, %c0_28] : memref<8x128xf32, #tpu.memory_space<vmem>>, vector<8x128xf32>
      tpu.vector_store %arg7[%c0_27, %c0_28], %39 {strides = array<i32>} : memref<8x128xf32, #tpu.memory_space<vmem>>, vector<8x128xf32>,
    }
    %c8_i32_8 = arith.constant 8 : i32
    %c0_i32_9 = arith.constant 0 : i32
    %c8_i32_10 = arith.constant 8 : i32
    %7 = arith.addi %c0_i32_9, %c8_i32_10 : i32
    %c1_i32_11 = arith.constant 1 : i32
    scf.for %arg8 = %c0_i32_9 to %7 step %c1_i32_11  : i32 {
      %c1_i32_13 = arith.constant 1 : i32
      %8 = arith.muli %arg8, %c1_i32_13 : i32
      %c0_i32_14 = arith.constant 0 : i32
      %9 = arith.addi %c0_i32_14, %8 : i32
      %10 = arith.index_cast %9 : i32 to index
      %c0_15 = arith.constant 0 : index
      %c0_16 = arith.constant 0 : index
      %11 = vector.load %arg2[%10, %c0_15, %c0_16] : memref<8x8x512xf32, #tpu.memory_space<vmem>>, vector<1x8x512xf32>
      %12 = vector.shape_cast %11 : vector<1x8x512xf32> to vector<8x512xf32>
      %c0_17 = arith.constant 0 : index
      %c0_18 = arith.constant 0 : index
      %13 = vector.load %arg6[%c0_17, %c0_18] : memref<8x128xf32, #tpu.memory_space<vmem>>, vector<8x128xf32>
      %c0_19 = arith.constant 0 : index
      %c0_20 = arith.constant 0 : index
      %14 = vector.load %arg7[%c0_19, %c0_20] : memref<8x128xf32, #tpu.memory_space<vmem>>, vector<8x128xf32>
      %cst_21 = arith.constant dense<0.000000e+00> : vector<8x512xf32>
      %15 = tpu.matmul %13, %5, %cst_21 {dimension_numbers = #tpu.dot_dimension_numbers<[1], [0], [0], [1], [0, 0, 1, 1], [], []>} : vector<8x128xf32>, vector<128x512xf32>, vector<8x512xf32> -> vector<8x512xf32>
      %16 = arith.addf %12, %15 : vector<8x512xf32>
      %17 = vector.extract_strided_slice %16 {offsets = [0, 0], sizes = [8, 128], strides = [1, 1]} : vector<8x512xf32> to vector<8x128xf32>
      %18 = arith.negf %17 : vector<8x128xf32>
      %19 = math.exp %18 : vector<8x128xf32>
      %cst_22 = arith.constant 1.000000e+00 : f32
      %20 = vector.broadcast %cst_22 : f32 to vector<8x128xf32>
      %21 = arith.addf %20, %19 : vector<8x128xf32>
      %22 = arith.divf %20, %21 : vector<8x128xf32>
      %23 = vector.extract_strided_slice %16 {offsets = [0, 128], sizes = [8, 128], strides = [1, 1]} : vector<8x512xf32> to vector<8x128xf32>
      %24 = arith.negf %23 : vector<8x128xf32>
      %25 = math.exp %24 : vector<8x128xf32>
      %cst_23 = arith.constant 1.000000e+00 : f32
      %26 = vector.broadcast %cst_23 : f32 to vector<8x128xf32>
      %27 = arith.addf %26, %25 : vector<8x128xf32>
      %28 = arith.divf %26, %27 : vector<8x128xf32>
      %29 = vector.extract_strided_slice %16 {offsets = [0, 256], sizes = [8, 128], strides = [1, 1]} : vector<8x512xf32> to vector<8x128xf32>
      %30 = math.tanh %29 : vector<8x128xf32>
      %31 = vector.extract_strided_slice %16 {offsets = [0, 384], sizes = [8, 128], strides = [1, 1]} : vector<8x512xf32> to vector<8x128xf32>
      %32 = arith.negf %31 : vector<8x128xf32>
      %33 = math.exp %32 : vector<8x128xf32>
      %cst_24 = arith.constant 1.000000e+00 : f32
      %34 = vector.broadcast %cst_24 : f32 to vector<8x128xf32>
      %35 = arith.addf %34, %33 : vector<8x128xf32>
      %36 = arith.divf %34, %35 : vector<8x128xf32>
      %37 = arith.mulf %28, %14 : vector<8x128xf32>
      %38 = arith.mulf %22, %30 : vector<8x128xf32>
      %39 = arith.addf %37, %38 : vector<8x128xf32>
      %40 = math.tanh %39 : vector<8x128xf32>
      %41 = arith.mulf %36, %40 : vector<8x128xf32>
      %c0_25 = arith.constant 0 : index
      %c0_26 = arith.constant 0 : index
      %42 = vector.load %arg6[%c0_25, %c0_26] : memref<8x128xf32, #tpu.memory_space<vmem>>, vector<8x128xf32>
      tpu.vector_store %arg6[%c0_25, %c0_26], %41 {strides = array<i32>} : memref<8x128xf32, #tpu.memory_space<vmem>>, vector<8x128xf32>,
      %c0_27 = arith.constant 0 : index
      %c0_28 = arith.constant 0 : index
      %43 = vector.load %arg7[%c0_27, %c0_28] : memref<8x128xf32, #tpu.memory_space<vmem>>, vector<8x128xf32>
      tpu.vector_store %arg7[%c0_27, %c0_28], %39 {strides = array<i32>} : memref<8x128xf32, #tpu.memory_space<vmem>>, vector<8x128xf32>,
      %44 = arith.index_cast %9 : i32 to index
      %c0_29 = arith.constant 0 : index
      %c0_30 = arith.constant 0 : index
      %45 = vector.load %arg5[%44, %c0_29, %c0_30] : memref<8x8x128xf32, #tpu.memory_space<vmem>>, vector<1x8x128xf32>
      %46 = vector.shape_cast %45 : vector<1x8x128xf32> to vector<8x128xf32>
      %47 = vector.shape_cast %41 : vector<8x128xf32> to vector<1x8x128xf32>
      tpu.vector_store %arg5[%44, %c0_29, %c0_30], %47 {strides = array<i32>} : memref<8x8x128xf32, #tpu.memory_space<vmem>>, vector<1x8x128xf32>,
    }
    %c8_i32_12 = arith.constant 8 : i32
    return
  }
  func.func @transform_0(%arg0: i32) -> (i32, i32, i32) {
    %c0_i32 = arith.constant 0 : i32
    %c0_i32_0 = arith.constant 0 : i32
    %c0_i32_1 = arith.constant 0 : i32
    %c0_i32_2 = arith.constant 0 : i32
    return %c0_i32, %c0_i32_0, %c0_i32_1 : i32, i32, i32
  }
  func.func @transform_1(%arg0: i32) -> (i32, i32, i32) {
    %c0_i32 = arith.constant 0 : i32
    %c0_i32_0 = arith.constant 0 : i32
    %c0_i32_1 = arith.constant 0 : i32
    %c0_i32_2 = arith.constant 0 : i32
    return %c0_i32, %c0_i32_0, %c0_i32_1 : i32, i32, i32
  }
  func.func @transform_2(%arg0: i32) -> (i32, i32) {
    %c0_i32 = arith.constant 0 : i32
    %c0_i32_0 = arith.constant 0 : i32
    %c0_i32_1 = arith.constant 0 : i32
    return %c0_i32, %c0_i32_0 : i32, i32
  }
  func.func @transform_3(%arg0: i32) -> (i32, i32) {
    %c0_i32 = arith.constant 0 : i32
    %c0_i32_0 = arith.constant 0 : i32
    %c0_i32_1 = arith.constant 0 : i32
    return %c0_i32, %c0_i32_0 : i32, i32
  }
  func.func @transform_4(%arg0: i32) -> (i32, i32, i32) {
    %c0_i32 = arith.constant 0 : i32
    %c0_i32_0 = arith.constant 0 : i32
    %c0_i32_1 = arith.constant 0 : i32
    %c0_i32_2 = arith.constant 0 : i32
    return %c0_i32, %c0_i32_0, %c0_i32_1 : i32, i32, i32
  }
}

module attributes {stable_mosaic.version = 11 : i64} {
  func.func @_matmul_bias_kernel(%arg0: i32, %arg1: memref<64x128xf32, #tpu.memory_space<vmem>>, %arg2: memref<128x128xf32, #tpu.memory_space<vmem>>, %arg3: memref<1x128xf32, #tpu.memory_space<vmem>>, %arg4: memref<64x128xf32, #tpu.memory_space<vmem>>) attributes {dimension_semantics = [#tpu.dimension_semantics<parallel>], iteration_bounds = array<i64: 1>, scalar_prefetch = 0 : i64, scratch_operands = 0 : i64, tpu.core_type = #tpu.core_type<tc>, window_params = [{pipeline_mode = #tpu.pipeline_mode<synchronous>, transform_indices = @transform_0, window_bounds = array<i64: 64, 128>}, {transform_indices = @transform_1, window_bounds = array<i64: 128, 128>}, {transform_indices = @transform_2, window_bounds = array<i64: 1, 128>}, {transform_indices = @transform_3, window_bounds = array<i64: 64, 128>}]} {
    %c0 = arith.constant 0 : index
    %c0_0 = arith.constant 0 : index
    %0 = vector.load %arg1[%c0, %c0_0] : memref<64x128xf32, #tpu.memory_space<vmem>>, vector<64x128xf32>
    %c0_1 = arith.constant 0 : index
    %c0_2 = arith.constant 0 : index
    %1 = vector.load %arg2[%c0_1, %c0_2] : memref<128x128xf32, #tpu.memory_space<vmem>>, vector<128x128xf32>
    %cst = arith.constant dense<0.000000e+00> : vector<64x128xf32>
    %2 = tpu.matmul %0, %1, %cst {dimension_numbers = #tpu.dot_dimension_numbers<[1], [0], [0], [1], [0, 0, 1, 1], [], []>} : vector<64x128xf32>, vector<128x128xf32>, vector<64x128xf32> -> vector<64x128xf32>
    %c0_3 = arith.constant 0 : index
    %c0_4 = arith.constant 0 : index
    %3 = vector.load %arg3[%c0_3, %c0_4] : memref<1x128xf32, #tpu.memory_space<vmem>>, vector<1x128xf32>
    %4 = vector.broadcast %3 : vector<1x128xf32> to vector<64x128xf32>
    %5 = arith.addf %2, %4 : vector<64x128xf32>
    %c0_5 = arith.constant 0 : index
    %c0_6 = arith.constant 0 : index
    %6 = vector.load %arg4[%c0_5, %c0_6] : memref<64x128xf32, #tpu.memory_space<vmem>>, vector<64x128xf32>
    tpu.vector_store %arg4[%c0_5, %c0_6], %5 {strides = array<i32>} : memref<64x128xf32, #tpu.memory_space<vmem>>, vector<64x128xf32>,
    return
  }
  func.func @transform_0(%arg0: i32) -> (i32, i32) {
    %c0_i32 = arith.constant 0 : i32
    %c0_i32_0 = arith.constant 0 : i32
    %c0_i32_1 = arith.constant 0 : i32
    return %c0_i32, %c0_i32_0 : i32, i32
  }
  func.func @transform_1(%arg0: i32) -> (i32, i32) {
    %c0_i32 = arith.constant 0 : i32
    %c0_i32_0 = arith.constant 0 : i32
    return %c0_i32, %arg0 : i32, i32
  }
  func.func @transform_2(%arg0: i32) -> (i32, i32) {
    %c0_i32 = arith.constant 0 : i32
    %c0_i32_0 = arith.constant 0 : i32
    return %c0_i32, %arg0 : i32, i32
  }
  func.func @transform_3(%arg0: i32) -> (i32, i32) {
    %c0_i32 = arith.constant 0 : i32
    %c0_i32_0 = arith.constant 0 : i32
    return %c0_i32, %arg0 : i32, i32
  }
}

module attributes {stable_mosaic.version = 11 : i64} {
  func.func @_matmul_bias_kernel(%arg0: i32, %arg1: memref<64x32xf32, #tpu.memory_space<vmem>>, %arg2: memref<32x512xf32, #tpu.memory_space<vmem>>, %arg3: memref<1x512xf32, #tpu.memory_space<vmem>>, %arg4: memref<64x512xf32, #tpu.memory_space<vmem>>) attributes {dimension_semantics = [#tpu.dimension_semantics<parallel>], iteration_bounds = array<i64: 1>, scalar_prefetch = 0 : i64, scratch_operands = 0 : i64, tpu.core_type = #tpu.core_type<tc>, window_params = [{pipeline_mode = #tpu.pipeline_mode<synchronous>, transform_indices = @transform_0, window_bounds = array<i64: 64, 32>}, {transform_indices = @transform_1, window_bounds = array<i64: 32, 512>}, {transform_indices = @transform_2, window_bounds = array<i64: 1, 512>}, {transform_indices = @transform_3, window_bounds = array<i64: 64, 512>}]} {
    %c0 = arith.constant 0 : index
    %c0_0 = arith.constant 0 : index
    %0 = vector.load %arg1[%c0, %c0_0] : memref<64x32xf32, #tpu.memory_space<vmem>>, vector<64x32xf32>
    %c0_1 = arith.constant 0 : index
    %c0_2 = arith.constant 0 : index
    %1 = vector.load %arg2[%c0_1, %c0_2] : memref<32x512xf32, #tpu.memory_space<vmem>>, vector<32x512xf32>
    %cst = arith.constant dense<0.000000e+00> : vector<64x512xf32>
    %2 = tpu.matmul %0, %1, %cst {dimension_numbers = #tpu.dot_dimension_numbers<[1], [0], [0], [1], [0, 0, 1, 1], [], []>} : vector<64x32xf32>, vector<32x512xf32>, vector<64x512xf32> -> vector<64x512xf32>
    %c0_3 = arith.constant 0 : index
    %c0_4 = arith.constant 0 : index
    %3 = vector.load %arg3[%c0_3, %c0_4] : memref<1x512xf32, #tpu.memory_space<vmem>>, vector<1x512xf32>
    %4 = vector.broadcast %3 : vector<1x512xf32> to vector<64x512xf32>
    %5 = arith.addf %2, %4 : vector<64x512xf32>
    %c0_5 = arith.constant 0 : index
    %c0_6 = arith.constant 0 : index
    %6 = vector.load %arg4[%c0_5, %c0_6] : memref<64x512xf32, #tpu.memory_space<vmem>>, vector<64x512xf32>
    tpu.vector_store %arg4[%c0_5, %c0_6], %5 {strides = array<i32>} : memref<64x512xf32, #tpu.memory_space<vmem>>, vector<64x512xf32>,
    return
  }
  func.func @transform_0(%arg0: i32) -> (i32, i32) {
    %c0_i32 = arith.constant 0 : i32
    %c0_i32_0 = arith.constant 0 : i32
    %c0_i32_1 = arith.constant 0 : i32
    return %c0_i32, %c0_i32_0 : i32, i32
  }
  func.func @transform_1(%arg0: i32) -> (i32, i32) {
    %c0_i32 = arith.constant 0 : i32
    %c0_i32_0 = arith.constant 0 : i32
    return %c0_i32, %arg0 : i32, i32
  }
  func.func @transform_2(%arg0: i32) -> (i32, i32) {
    %c0_i32 = arith.constant 0 : i32
    %c0_i32_0 = arith.constant 0 : i32
    return %c0_i32, %arg0 : i32, i32
  }
  func.func @transform_3(%arg0: i32) -> (i32, i32) {
    %c0_i32 = arith.constant 0 : i32
    %c0_i32_0 = arith.constant 0 : i32
    return %c0_i32, %arg0 : i32, i32
  }
}

</mosaic_0001>

<llo_original>
// kernel: encoder_decoder_forward.7
$region0: #{encoder_decoder_forward.7}
  #allocation0 [shape = 'u32[]', space=smem, size = 0x4, offset = 0x4, fixed_abs, tag = 'smem constant byte address 0x4 - core index']
  #allocation1 [shape = 'u32[144,128]{1,0:T(1,128)}', space=vmem, size = 0x12000, scoped, tag = 'internal scratch']
  %s0 = inlined_call_operand.vmem [shape: f32[64,128], index: 0, kind: input, shape index: {}]
  %s1 = inlined_call_operand.vmem [shape: f32[128,128], index: 1, kind: input, shape index: {}]
  %s2 = inlined_call_operand.vmem [shape: f32[1,128], index: 2, kind: input, shape index: {}]
  %s3 = inlined_call_operand.hbm [shape: f32[64,128], index: 3, kind: output, shape index: {}]
  %s4 = sld [smem:[#allocation0]]
  $region22: #{encoder_decoder_forward.7} parent=0
    _
  %s6 = ssub.s32 1, %s4
  %s7 = scalar_select 0, %s6, %s4
  $region1: #{encoder_decoder_forward.7} parent=0
    #allocation2 [shape = 'u8[32768]{0}', space=vmem, size = 0x8000, scoped, tag = 'output window, operand 0, single buffered']
    #allocation3 [shape = 's32[1]{0}', space=sflag, size = 0x4, scoped, tag = 'scoped memory for encoder_decoder_forward.7']
    %8 = vsyncpa [#allocation3], 0
    // Predicated region
    $region2: #{encoder_decoder_forward.7} parent=1 // pred_check
      _
    $region3: #{encoder_decoder_forward.7} parent=1 // pred_check_branch
      %10 = sbr.rel (0) target = $region5
    $region4: #{encoder_decoder_forward.7} parent=1 // pred_region
      _
    $region5: #{encoder_decoder_forward.7} parent=1 // pred_fallthru
      _
    // Predicated region
    $region6: #{encoder_decoder_forward.7} parent=1 // pred_check
      _
    $region7: #{encoder_decoder_forward.7} parent=1 // pred_check_branch
      %12 = sbr.rel (0) target = $region9
    $region8: #{encoder_decoder_forward.7} parent=1 // pred_region
      _
    $region9: #{encoder_decoder_forward.7} parent=1 // pred_fallthru
      _
    // Predicated region
    $region10: #{encoder_decoder_forward.7} parent=1 // pred_check
      _
    $region11: #{encoder_decoder_forward.7} parent=1 // pred_check_branch
      %14 = sbr.rel (0) target = $region13
    $region12: #{encoder_decoder_forward.7} parent=1 // pred_region
      _
    $region13: #{encoder_decoder_forward.7} parent=1 // pred_fallthru
      _
    %v15 = vld [vmem:[%s0] sm:$0xff]
    %v16 = vld [vmem:[%s0 + $0x8] sm:$0xff]
    %v17 = vld [vmem:[%s0 + $0x10] sm:$0xff]
    %v18 = vld [vmem:[%s0 + $0x18] sm:$0xff]
    %v19 = vld [vmem:[%s0 + $0x20] sm:$0xff]
    %v20 = vld [vmem:[%s0 + $0x28] sm:$0xff]
    %v21 = vld [vmem:[%s0 + $0x30] sm:$0xff]
    %v22 = vld [vmem:[%s0 + $0x38] sm:$0xff]
    %v23 = vld [vmem:[%s1] sm:$0xff]
    %v24 = vld [vmem:[%s1 + $0x8] sm:$0xff]
    %v25 = vld [vmem:[%s1 + $0x10] sm:$0xff]
    %v26 = vld [vmem:[%s1 + $0x18] sm:$0xff]
    %v27 = vld [vmem:[%s1 + $0x20] sm:$0xff]
    %v28 = vld [vmem:[%s1 + $0x28] sm:$0xff]
    %v29 = vld [vmem:[%s1 + $0x30] sm:$0xff]
    %v30 = vld [vmem:[%s1 + $0x38] sm:$0xff]
    %v31 = vld [vmem:[%s1 + $0x40] sm:$0xff]
    %v32 = vld [vmem:[%s1 + $0x48] sm:$0xff]
    %v33 = vld [vmem:[%s1 + $0x50] sm:$0xff]
    %v34 = vld [vmem:[%s1 + $0x58] sm:$0xff]
    %v35 = vld [vmem:[%s1 + $0x60] sm:$0xff]
    %v36 = vld [vmem:[%s1 + $0x68] sm:$0xff]
    %v37 = vld [vmem:[%s1 + $0x70] sm:$0xff]
    %v38 = vld [vmem:[%s1 + $0x78] sm:$0xff]
    %v39 = vld [vmem:[%s2] sm:$0x1]
    %v41 = vlaneseq
    %v42 = vshrl.u32 %v41, 7
    %v43 = vsub.s32 0, %v42
    %v44 = vrot.slane %v39, %v43
    %46 = vmatprep.subr.mxu0 0.0
    %47 = vmatpush1.msra.mxu0 %v38
    %48 = vmatprep.subr.mxu0 0.0
    %49 = vmatpush1.msra.mxu0 %v37
    %50 = vmatprep.subr.mxu0 0.0
    %51 = vmatpush1.msra.mxu0 %v36
    %52 = vmatprep.subr.mxu0 0.0
    %53 = vmatpush1.msra.mxu0 %v35
    %54 = vmatprep.subr.mxu0 0.0
    %55 = vmatpush1.msra.mxu0 %v34
    %56 = vmatprep.subr.mxu0 0.0
    %57 = vmatpush1.msra.mxu0 %v33
    %58 = vmatprep.subr.mxu0 0.0
    %59 = vmatpush1.msra.mxu0 %v32
    %60 = vmatprep.subr.mxu0 0.0
    %61 = vmatpush1.msra.mxu0 %v31
    %62 = vmatprep.subr.mxu0 0.0
    %63 = vmatpush1.msra.mxu0 %v30
    %64 = vmatprep.subr.mxu0 0.0
    %65 = vmatpush1.msra.mxu0 %v29
    %66 = vmatprep.subr.mxu0 0.0
    %67 = vmatpush1.msra.mxu0 %v28
    %68 = vmatprep.subr.mxu0 0.0
    %69 = vmatpush1.msra.mxu0 %v27
    %70 = vmatprep.subr.mxu0 0.0
    %71 = vmatpush1.msra.mxu0 %v26
    %72 = vmatprep.subr.mxu0 0.0
    %73 = vmatpush1.msra.mxu0 %v25
    %74 = vmatprep.subr.mxu0 0.0
    %75 = vmatpush1.msra.mxu0 %v24
    %76 = vmatprep.subr.mxu0 0.0
    %77 = vmatpush1.msra.mxu0 %v23
    %78 = vmatprep.subr.mxu0 0.0
    %79 = vmatpush2.msra.mxu0 0.0
    %80 = vmatprep.subr.mxu0 0.0
    %81 = vmatpush2.msra.mxu0 0.0
    %82 = vmatprep.subr.mxu0 0.0
    %83 = vmatpush2.msra.mxu0 0.0
    %84 = vmatprep.subr.mxu0 0.0
    %85 = vmatpush2.msra.mxu0 0.0
    %86 = vmatprep.subr.mxu0 0.0
    %87 = vmatpush2.msra.mxu0 0.0
    %88 = vmatprep.subr.mxu0 0.0
    %89 = vmatpush2.msra.mxu0 0.0
    %90 = vmatprep.subr.mxu0 0.0
    %91 = vmatpush2.msra.mxu0 0.0
    %92 = vmatprep.subr.mxu0 0.0
    %93 = vmatpush2.msra.mxu0 0.0
    %94 = vmatprep.subr.mxu0 0.0
    %95 = vmatpush2.msra.mxu0 0.0
    %96 = vmatprep.subr.mxu0 0.0
    %97 = vmatpush2.msra.mxu0 0.0
    %98 = vmatprep.subr.mxu0 0.0
    %99 = vmatpush2.msra.mxu0 0.0
    %100 = vmatprep.subr.mxu0 0.0
    %101 = vmatpush2.msra.mxu0 0.0
    %102 = vmatprep.subr.mxu0 0.0
    %103 = vmatpush2.msra.mxu0 0.0
    %104 = vmatprep.subr.mxu0 0.0
    %105 = vmatpush2.msra.mxu0 0.0
    %106 = vmatprep.subr.mxu0 0.0
    %107 = vmatpush2.msra.mxu0 0.0
    %108 = vmatprep.subr.mxu0 0.0
    %109 = vmatpush2.msra.mxu0 0.0
    %110 = vmatprep.mubr.f32.mxu0 0.0
    %111 = vmatmul.mubr.f32.gmra.mxu0 %v15
    %v112 = vpop.f32.mrf.mxu0
    %v113 = vadd.f32 %v44, %v112
    %v114 = vpop.f32.mrf.mxu0
    %115 = vmatprep.mubr.f32.mxu0 0.0
    %116 = vmatmul.mubr.f32.gmra.mxu0 %v16
    %v117 = vpop.f32.mrf.mxu0
    %v118 = vadd.f32 %v44, %v117
    %v119 = vpop.f32.mrf.mxu0
    %120 = vmatprep.mubr.f32.mxu0 0.0
    %121 = vmatmul.mubr.f32.gmra.mxu0 %v17
    %v122 = vpop.f32.mrf.mxu0
    %v123 = vadd.f32 %v44, %v122
    %v124 = vpop.f32.mrf.mxu0
    %125 = vmatprep.mubr.f32.mxu0 0.0
    %126 = vmatmul.mubr.f32.gmra.mxu0 %v18
    %v127 = vpop.f32.mrf.mxu0
    %v128 = vadd.f32 %v44, %v127
    %v129 = vpop.f32.mrf.mxu0
    %130 = vmatprep.mubr.f32.mxu0 0.0
    %131 = vmatmul.mubr.f32.gmra.mxu0 %v19
    %v132 = vpop.f32.mrf.mxu0
    %v133 = vadd.f32 %v44, %v132
    %v134 = vpop.f32.mrf.mxu0
    %135 = vmatprep.mubr.f32.mxu0 0.0
    %136 = vmatmul.mubr.f32.gmra.mxu0 %v20
    %v137 = vpop.f32.mrf.mxu0
    %v138 = vadd.f32 %v44, %v137
    %v139 = vpop.f32.mrf.mxu0
    %140 = vmatprep.mubr.f32.mxu0 0.0
    %141 = vmatmul.mubr.f32.gmra.mxu0 %v21
    %v142 = vpop.f32.mrf.mxu0
    %v143 = vadd.f32 %v44, %v142
    %v144 = vpop.f32.mrf.mxu0
    %145 = vmatprep.mubr.f32.mxu0 0.0
    %146 = vmatmul.mubr.f32.gmra.mxu0 %v22
    %v147 = vpop.f32.mrf.mxu0
    %v148 = vadd.f32 %v44, %v147
    %v149 = vpop.f32.mrf.mxu0
    %150 = vdwg.mxu0
    %151 = vst [vmem:[#allocation2] sm:$0xff] %v113
    %152 = vst [vmem:[#allocation2 + $0x8] sm:$0xff] %v118
    %153 = vst [vmem:[#allocation2 + $0x10] sm:$0xff] %v123
    %154 = vst [vmem:[#allocation2 + $0x18] sm:$0xff] %v128
    %155 = vst [vmem:[#allocation2 + $0x20] sm:$0xff] %v133
    %156 = vst [vmem:[#allocation2 + $0x28] sm:$0xff] %v138
    %157 = vst [vmem:[#allocation2 + $0x30] sm:$0xff] %v143
    %158 = vst [vmem:[#allocation2 + $0x38] sm:$0xff] %v148
    // Predicated region
    $region14: #{encoder_decoder_forward.7} parent=1 // pred_check
      _
    $region15: #{encoder_decoder_forward.7} parent=1 // pred_check_branch
      %160 = sbr.rel (0) target = $region17
    $region16: #{encoder_decoder_forward.7} parent=1 // pred_region
      %s162 = ssub.s32 1024, 1024
      %163 = vsyncadd [#allocation3], %s162
      %s164 = sshll.u32 [#allocation2], 4
      %s165 = int_to_ptr.vmem [resolvable:$true] %s164
      %170 = dma.vmem_to_hbm [thread:$0]  %s165, 1024, %s3, [#allocation3], 128, 128, 8
    $region17: #{encoder_decoder_forward.7} parent=1 // pred_fallthru
      _
    // Predicated region
    $region18: #{encoder_decoder_forward.7} parent=1 // pred_check
      _
    $region19: #{encoder_decoder_forward.7} parent=1 // pred_check_branch
      %172 = sbr.rel (0) target = $region21
    $region20: #{encoder_decoder_forward.7} parent=1 // pred_region
      %173 = dma.done [#allocation3], 1024
    $region21: #{encoder_decoder_forward.7} parent=1 // pred_fallthru
      _
    %174 = vsyncpa [#allocation3], 1

// kernel: encoder_decoder_forward.4
$region0: #{encoder_decoder_forward.4}
  #allocation0 [shape = 'u32[]', space=smem, size = 0x4, offset = 0x4, fixed_abs, tag = 'smem constant byte address 0x4 - core index']
  #allocation1 [shape = 'u32[144,128]{1,0:T(1,128)}', space=vmem, size = 0x12000, scoped, tag = 'internal scratch']
  %s0 = inlined_call_operand.vmem [shape: f32[64,32], index: 0, kind: input, shape index: {}]
  %s1 = inlined_call_operand.vmem [shape: f32[32,512], index: 1, kind: input, shape index: {}]
  %s2 = inlined_call_operand.vmem [shape: f32[1,512], index: 2, kind: input, shape index: {}]
  %s3 = inlined_call_operand.vmem [shape: f32[64,512], index: 3, kind: output, shape index: {}]
  %s4 = sld [smem:[#allocation0]]
  $region22: #{encoder_decoder_forward.4} parent=0
    _
  %s6 = ssub.s32 1, %s4
  %s7 = scalar_select 0, %s6, %s4
  // Predicated region
  $region2: #{encoder_decoder_forward.4} parent=0 // pred_check
    _
  $region3: #{encoder_decoder_forward.4} parent=0 // pred_check_branch
    %9 = sbr.rel (0) target = $region5
  $region4: #{encoder_decoder_forward.4} parent=0 // pred_region
    _
  $region5: #{encoder_decoder_forward.4} parent=0 // pred_fallthru
    _
  // Predicated region
  $region6: #{encoder_decoder_forward.4} parent=0 // pred_check
    _
  $region7: #{encoder_decoder_forward.4} parent=0 // pred_check_branch
    %11 = sbr.rel (0) target = $region9
  $region8: #{encoder_decoder_forward.4} parent=0 // pred_region
    _
  $region9: #{encoder_decoder_forward.4} parent=0 // pred_fallthru
    _
  // Predicated region
  $region10: #{encoder_decoder_forward.4} parent=0 // pred_check
    _
  $region11: #{encoder_decoder_forward.4} parent=0 // pred_check_branch
    %13 = sbr.rel (0) target = $region13
  $region12: #{encoder_decoder_forward.4} parent=0 // pred_region
    _
  $region13: #{encoder_decoder_forward.4} parent=0 // pred_fallthru
    _
  %v14 = vld [vmem:[%s0] sm:$0xff]
  %v15 = vld [vmem:[%s0 + $0x8] sm:$0xff]
  %v16 = vld [vmem:[%s0 + $0x10] sm:$0xff]
  %v17 = vld [vmem:[%s0 + $0x18] sm:$0xff]
  %v18 = vld [vmem:[%s0 + $0x20] sm:$0xff]
  %v19 = vld [vmem:[%s0 + $0x28] sm:$0xff]
  %v20 = vld [vmem:[%s0 + $0x30] sm:$0xff]
  %v21 = vld [vmem:[%s0 + $0x38] sm:$0xff]
  %v22 = vld [vmem:[%s1] sm:$0xff]
  %v23 = vld [vmem:[%s1 + $0x8] sm:$0xff]
  %v24 = vld [vmem:[%s1 + $0x10] sm:$0xff]
  %v25 = vld [vmem:[%s1 + $0x18] sm:$0xff]
  %v26 = vld [vmem:[%s1 + $0x20] sm:$0xff]
  %v27 = vld [vmem:[%s1 + $0x28] sm:$0xff]
  %v28 = vld [vmem:[%s1 + $0x30] sm:$0xff]
  %v29 = vld [vmem:[%s1 + $0x38] sm:$0xff]
  %v30 = vld [vmem:[%s1 + $0x40] sm:$0xff]
  %v31 = vld [vmem:[%s1 + $0x48] sm:$0xff]
  %v32 = vld [vmem:[%s1 + $0x50] sm:$0xff]
  %v33 = vld [vmem:[%s1 + $0x58] sm:$0xff]
  %v34 = vld [vmem:[%s1 + $0x60] sm:$0xff]
  %v35 = vld [vmem:[%s1 + $0x68] sm:$0xff]
  %v36 = vld [vmem:[%s1 + $0x70] sm:$0xff]
  %v37 = vld [vmem:[%s1 + $0x78] sm:$0xff]
  %v38 = vld [vmem:[%s2] sm:$0xf]
  %v40 = vlaneseq
  %v41 = vshrl.u32 %v40, 7
  %v42 = vsub.s32 0, %v41
  %v43 = vrot.slane %v38, %v42
  %v44 = vlaneseq
  %v45 = vshrl.u32 %v44, 7
  %v46 = vsub.s32 1, %v45
  %v47 = vrot.slane %v38, %v46
  %v48 = vlaneseq
  %v49 = vshrl.u32 %v48, 7
  %v50 = vsub.s32 2, %v49
  %v51 = vrot.slane %v38, %v50
  %v52 = vlaneseq
  %v53 = vshrl.u32 %v52, 7
  %v54 = vsub.s32 3, %v53
  %v55 = vrot.slane %v38, %v54
  %vm60 = vcmask 261120
  %v62 = vsel %vm60, %v14, 0
  %v65 = vsel %vm60, %v15, 0
  %v68 = vsel %vm60, %v16, 0
  %v71 = vsel %vm60, %v17, 0
  %v74 = vsel %vm60, %v18, 0
  %v77 = vsel %vm60, %v19, 0
  %v80 = vsel %vm60, %v20, 0
  %v83 = vsel %vm60, %v21, 0
  %85 = vmatprep.subr.mxu0 0.0
  %86 = vmatpush1.msra.mxu0 0.0
  %87 = vmatprep.subr.mxu0 0.0
  %88 = vmatpush1.msra.mxu0 0.0
  %89 = vmatprep.subr.mxu0 0.0
  %90 = vmatpush1.msra.mxu0 0.0
  %91 = vmatprep.subr.mxu0 0.0
  %92 = vmatpush1.msra.mxu0 0.0
  %93 = vmatprep.subr.mxu0 0.0
  %94 = vmatpush1.msra.mxu0 0.0
  %95 = vmatprep.subr.mxu0 0.0
  %96 = vmatpush1.msra.mxu0 0.0
  %97 = vmatprep.subr.mxu0 0.0
  %98 = vmatpush1.msra.mxu0 0.0
  %99 = vmatprep.subr.mxu0 0.0
  %100 = vmatpush1.msra.mxu0 0.0
  %101 = vmatprep.subr.mxu0 0.0
  %102 = vmatpush1.msra.mxu0 0.0
  %103 = vmatprep.subr.mxu0 0.0
  %104 = vmatpush1.msra.mxu0 0.0
  %105 = vmatprep.subr.mxu0 0.0
  %106 = vmatpush1.msra.mxu0 0.0
  %107 = vmatprep.subr.mxu0 0.0
  %108 = vmatpush1.msra.mxu0 0.0
  %109 = vmatprep.subr.mxu0 %v35
  %110 = vmatpush1.msra.mxu0 %v34
  %111 = vmatprep.subr.mxu0 %v31
  %112 = vmatpush1.msra.mxu0 %v30
  %113 = vmatprep.subr.mxu0 %v27
  %114 = vmatpush1.msra.mxu0 %v26
  %115 = vmatprep.subr.mxu0 %v23
  %116 = vmatpush1.msra.mxu0 %v22
  %117 = vmatprep.subr.mxu0 0.0
  %118 = vmatpush2.msra.mxu0 0.0
  %119 = vmatprep.subr.mxu0 0.0
  %120 = vmatpush2.msra.mxu0 0.0
  %121 = vmatprep.subr.mxu0 0.0
  %122 = vmatpush2.msra.mxu0 0.0
  %123 = vmatprep.subr.mxu0 0.0
  %124 = vmatpush2.msra.mxu0 0.0
  %125 = vmatprep.subr.mxu0 0.0
  %126 = vmatpush2.msra.mxu0 0.0
  %127 = vmatprep.subr.mxu0 0.0
  %128 = vmatpush2.msra.mxu0 0.0
  %129 = vmatprep.subr.mxu0 0.0
  %130 = vmatpush2.msra.mxu0 0.0
  %131 = vmatprep.subr.mxu0 0.0
  %132 = vmatpush2.msra.mxu0 0.0
  %133 = vmatprep.subr.mxu0 0.0
  %134 = vmatpush2.msra.mxu0 0.0
  %135 = vmatprep.subr.mxu0 0.0
  %136 = vmatpush2.msra.mxu0 0.0
  %137 = vmatprep.subr.mxu0 0.0
  %138 = vmatpush2.msra.mxu0 0.0
  %139 = vmatprep.subr.mxu0 0.0
  %140 = vmatpush2.msra.mxu0 0.0
  %141 = vmatprep.subr.mxu0 0.0
  %142 = vmatpush2.msra.mxu0 0.0
  %143 = vmatprep.subr.mxu0 0.0
  %144 = vmatpush2.msra.mxu0 0.0
  %145 = vmatprep.subr.mxu0 0.0
  %146 = vmatpush2.msra.mxu0 0.0
  %147 = vmatprep.subr.mxu0 0.0
  %148 = vmatpush2.msra.mxu0 0.0
  %149 = vmatprep.mubr.f32.mxu0 0.0
  %150 = vmatmul.mubr.f32.gmra.mxu0 %v62
  %v151 = vpop.f32.mrf.mxu0
  %v152 = vadd.f32 %v43, %v151
  %v153 = vpop.f32.mrf.mxu0
  %v154 = vadd.f32 %v47, %v153
  %155 = vmatprep.mubr.f32.mxu0 0.0
  %156 = vmatmul.mubr.f32.gmra.mxu0 %v65
  %v157 = vpop.f32.mrf.mxu0
  %v158 = vadd.f32 %v43, %v157
  %v159 = vpop.f32.mrf.mxu0
  %v160 = vadd.f32 %v47, %v159
  %161 = vmatprep.mubr.f32.mxu0 0.0
  %162 = vmatmul.mubr.f32.gmra.mxu0 %v68
  %v163 = vpop.f32.mrf.mxu0
  %v164 = vadd.f32 %v43, %v163
  %v165 = vpop.f32.mrf.mxu0
  %v166 = vadd.f32 %v47, %v165
  %167 = vmatprep.mubr.f32.mxu0 0.0
  %168 = vmatmul.mubr.f32.gmra.mxu0 %v71
  %v169 = vpop.f32.mrf.mxu0
  %v170 = vadd.f32 %v43, %v169
  %v171 = vpop.f32.mrf.mxu0
  %v172 = vadd.f32 %v47, %v171
  %173 = vmatprep.mubr.f32.mxu0 0.0
  %174 = vmatmul.mubr.f32.gmra.mxu0 %v74
  %v175 = vpop.f32.mrf.mxu0
  %v176 = vadd.f32 %v43, %v175
  %v177 = vpop.f32.mrf.mxu0
  %v178 = vadd.f32 %v47, %v177
  %179 = vmatprep.mubr.f32.mxu0 0.0
  %180 = vmatmul.mubr.f32.gmra.mxu0 %v77
  %v181 = vpop.f32.mrf.mxu0
  %v182 = vadd.f32 %v43, %v181
  %v183 = vpop.f32.mrf.mxu0
  %v184 = vadd.f32 %v47, %v183
  %185 = vmatprep.mubr.f32.mxu0 0.0
  %186 = vmatmul.mubr.f32.gmra.mxu0 %v80
  %v187 = vpop.f32.mrf.mxu0
  %v188 = vadd.f32 %v43, %v187
  %v189 = vpop.f32.mrf.mxu0
  %v190 = vadd.f32 %v47, %v189
  %191 = vmatprep.mubr.f32.mxu0 0.0
  %192 = vmatmul.mubr.f32.gmra.mxu0 %v83
  %v193 = vpop.f32.mrf.mxu0
  %v194 = vadd.f32 %v43, %v193
  %v195 = vpop.f32.mrf.mxu0
  %v196 = vadd.f32 %v47, %v195
  %197 = vdwg.mxu0
  %198 = vmatprep.subr.mxu0 0.0
  %199 = vmatpush1.msra.mxu0 0.0
  %200 = vmatprep.subr.mxu0 0.0
  %201 = vmatpush1.msra.mxu0 0.0
  %202 = vmatprep.subr.mxu0 0.0
  %203 = vmatpush1.msra.mxu0 0.0
  %204 = vmatprep.subr.mxu0 0.0
  %205 = vmatpush1.msra.mxu0 0.0
  %206 = vmatprep.subr.mxu0 0.0
  %207 = vmatpush1.msra.mxu0 0.0
  %208 = vmatprep.subr.mxu0 0.0
  %209 = vmatpush1.msra.mxu0 0.0
  %210 = vmatprep.subr.mxu0 0.0
  %211 = vmatpush1.msra.mxu0 0.0
  %212 = vmatprep.subr.mxu0 0.0
  %213 = vmatpush1.msra.mxu0 0.0
  %214 = vmatprep.subr.mxu0 0.0
  %215 = vmatpush1.msra.mxu0 0.0
  %216 = vmatprep.subr.mxu0 0.0
  %217 = vmatpush1.msra.mxu0 0.0
  %218 = vmatprep.subr.mxu0 0.0
  %219 = vmatpush1.msra.mxu0 0.0
  %220 = vmatprep.subr.mxu0 0.0
  %221 = vmatpush1.msra.mxu0 0.0
  %222 = vmatprep.subr.mxu0 %v37
  %223 = vmatpush1.msra.mxu0 %v36
  %224 = vmatprep.subr.mxu0 %v33
  %225 = vmatpush1.msra.mxu0 %v32
  %226 = vmatprep.subr.mxu0 %v29
  %227 = vmatpush1.msra.mxu0 %v28
  %228 = vmatprep.subr.mxu0 %v25
  %229 = vmatpush1.msra.mxu0 %v24
  %230 = vmatprep.subr.mxu0 0.0
  %231 = vmatpush2.msra.mxu0 0.0
  %232 = vmatprep.subr.mxu0 0.0
  %233 = vmatpush2.msra.mxu0 0.0
  %234 = vmatprep.subr.mxu0 0.0
  %235 = vmatpush2.msra.mxu0 0.0
  %236 = vmatprep.subr.mxu0 0.0
  %237 = vmatpush2.msra.mxu0 0.0
  %238 = vmatprep.subr.mxu0 0.0
  %239 = vmatpush2.msra.mxu0 0.0
  %240 = vmatprep.subr.mxu0 0.0
  %241 = vmatpush2.msra.mxu0 0.0
  %242 = vmatprep.subr.mxu0 0.0
  %243 = vmatpush2.msra.mxu0 0.0
  %244 = vmatprep.subr.mxu0 0.0
  %245 = vmatpush2.msra.mxu0 0.0
  %246 = vmatprep.subr.mxu0 0.0
  %247 = vmatpush2.msra.mxu0 0.0
  %248 = vmatprep.subr.mxu0 0.0
  %249 = vmatpush2.msra.mxu0 0.0
  %250 = vmatprep.subr.mxu0 0.0
  %251 = vmatpush2.msra.mxu0 0.0
  %252 = vmatprep.subr.mxu0 0.0
  %253 = vmatpush2.msra.mxu0 0.0
  %254 = vmatprep.subr.mxu0 0.0
  %255 = vmatpush2.msra.mxu0 0.0
  %256 = vmatprep.subr.mxu0 0.0
  %257 = vmatpush2.msra.mxu0 0.0
  %258 = vmatprep.subr.mxu0 0.0
  %259 = vmatpush2.msra.mxu0 0.0
  %260 = vmatprep.subr.mxu0 0.0
  %261 = vmatpush2.msra.mxu0 0.0
  %262 = vmatprep.mubr.f32.mxu0 0.0
  %263 = vmatmul.mubr.f32.gmra.mxu0 %v62
  %v264 = vpop.f32.mrf.mxu0
  %v265 = vadd.f32 %v51, %v264
  %v266 = vpop.f32.mrf.mxu0
  %v267 = vadd.f32 %v55, %v266
  %268 = vmatprep.mubr.f32.mxu0 0.0
  %269 = vmatmul.mubr.f32.gmra.mxu0 %v65
  %v270 = vpop.f32.mrf.mxu0
  %v271 = vadd.f32 %v51, %v270
  %v272 = vpop.f32.mrf.mxu0
  %v273 = vadd.f32 %v55, %v272
  %274 = vmatprep.mubr.f32.mxu0 0.0
  %275 = vmatmul.mubr.f32.gmra.mxu0 %v68
  %v276 = vpop.f32.mrf.mxu0
  %v277 = vadd.f32 %v51, %v276
  %v278 = vpop.f32.mrf.mxu0
  %v279 = vadd.f32 %v55, %v278
  %280 = vmatprep.mubr.f32.mxu0 0.0
  %281 = vmatmul.mubr.f32.gmra.mxu0 %v71
  %v282 = vpop.f32.mrf.mxu0
  %v283 = vadd.f32 %v51, %v282
  %v284 = vpop.f32.mrf.mxu0
  %v285 = vadd.f32 %v55, %v284
  %286 = vmatprep.mubr.f32.mxu0 0.0
  %287 = vmatmul.mubr.f32.gmra.mxu0 %v74
  %v288 = vpop.f32.mrf.mxu0
  %v289 = vadd.f32 %v51, %v288
  %v290 = vpop.f32.mrf.mxu0
  %v291 = vadd.f32 %v55, %v290
  %292 = vmatprep.mubr.f32.mxu0 0.0
  %293 = vmatmul.mubr.f32.gmra.mxu0 %v77
  %v294 = vpop.f32.mrf.mxu0
  %v295 = vadd.f32 %v51, %v294
  %v296 = vpop.f32.mrf.mxu0
  %v297 = vadd.f32 %v55, %v296
  %298 = vmatprep.mubr.f32.mxu0 0.0
  %299 = vmatmul.mubr.f32.gmra.mxu0 %v80
  %v300 = vpop.f32.mrf.mxu0
  %v301 = vadd.f32 %v51, %v300
  %v302 = vpop.f32.mrf.mxu0
  %v303 = vadd.f32 %v55, %v302
  %304 = vmatprep.mubr.f32.mxu0 0.0
  %305 = vmatmul.mubr.f32.gmra.mxu0 %v83
  %v306 = vpop.f32.mrf.mxu0
  %v307 = vadd.f32 %v51, %v306
  %v308 = vpop.f32.mrf.mxu0
  %v309 = vadd.f32 %v55, %v308
  %310 = vdwg.mxu0
  %311 = vst [vmem:[%s3] sm:$0xff] %v152
  %312 = vst [vmem:[%s3 + $0x8] sm:$0xff] %v154
  %313 = vst [vmem:[%s3 + $0x10] sm:$0xff] %v265
  %314 = vst [vmem:[%s3 + $0x18] sm:$0xff] %v267
  %315 = vst [vmem:[%s3 + $0x20] sm:$0xff] %v158
  %316 = vst [vmem:[%s3 + $0x28] sm:$0xff] %v160
  %317 = vst [vmem:[%s3 + $0x30] sm:$0xff] %v271
  %318 = vst [vmem:[%s3 + $0x38] sm:$0xff] %v273
  %319 = vst [vmem:[%s3 + $0x40] sm:$0xff] %v164
  %320 = vst [vmem:[%s3 + $0x48] sm:$0xff] %v166
  %321 = vst [vmem:[%s3 + $0x50] sm:$0xff] %v277
  %322 = vst [vmem:[%s3 + $0x58] sm:$0xff] %v279
  %323 = vst [vmem:[%s3 + $0x60] sm:$0xff] %v170
  %324 = vst [vmem:[%s3 + $0x68] sm:$0xff] %v172
  %325 = vst [vmem:[%s3 + $0x70] sm:$0xff] %v283
  %326 = vst [vmem:[%s3 + $0x78] sm:$0xff] %v285
  %327 = vst [vmem:[%s3 + $0x80] sm:$0xff] %v176
  %328 = vst [vmem:[%s3 + $0x88] sm:$0xff] %v178
  %329 = vst [vmem:[%s3 + $0x90] sm:$0xff] %v289
  %330 = vst [vmem:[%s3 + $0x98] sm:$0xff] %v291
  %331 = vst [vmem:[%s3 + $0xa0] sm:$0xff] %v182
  %332 = vst [vmem:[%s3 + $0xa8] sm:$0xff] %v184
  %333 = vst [vmem:[%s3 + $0xb0] sm:$0xff] %v295
  %334 = vst [vmem:[%s3 + $0xb8] sm:$0xff] %v297
  %335 = vst [vmem:[%s3 + $0xc0] sm:$0xff] %v188
  %336 = vst [vmem:[%s3 + $0xc8] sm:$0xff] %v190
  %337 = vst [vmem:[%s3 + $0xd0] sm:$0xff] %v301
  %338 = vst [vmem:[%s3 + $0xd8] sm:$0xff] %v303
  %339 = vst [vmem:[%s3 + $0xe0] sm:$0xff] %v194
  %340 = vst [vmem:[%s3 + $0xe8] sm:$0xff] %v196
  %341 = vst [vmem:[%s3 + $0xf0] sm:$0xff] %v307
  %342 = vst [vmem:[%s3 + $0xf8] sm:$0xff] %v309
  // Predicated region
  $region14: #{encoder_decoder_forward.4} parent=0 // pred_check
    _
  $region15: #{encoder_decoder_forward.4} parent=0 // pred_check_branch
    %344 = sbr.rel (0) target = $region17
  $region16: #{encoder_decoder_forward.4} parent=0 // pred_region
    _
  $region17: #{encoder_decoder_forward.4} parent=0 // pred_fallthru
    _
  // Predicated region
  $region18: #{encoder_decoder_forward.4} parent=0 // pred_check
    _
  $region19: #{encoder_decoder_forward.4} parent=0 // pred_check_branch
    %346 = sbr.rel (0) target = $region21
  $region20: #{encoder_decoder_forward.4} parent=0 // pred_region
    _
  $region21: #{encoder_decoder_forward.4} parent=0 // pred_fallthru
    _

// kernel: encoder_decoder_forward.6
$region0: #{encoder_decoder_forward.6}
  #allocation0 [shape = 'u32[]', space=smem, size = 0x4, offset = 0x4, fixed_abs, tag = 'smem constant byte address 0x4 - core index']
  #allocation1 [shape = 'u32[144,128]{1,0:T(1,128)}', space=vmem, size = 0x12000, scoped, tag = 'internal scratch']
  #allocation2 [shape = 'f32[8,128]{1,0:T(8,128)}', space=vmem, size = 0x1000, scoped, tag = 'scratch operand']
  #allocation3 [shape = 'f32[8,128]{1,0:T(8,128)}', space=vmem, size = 0x1000, scoped, tag = 'scratch operand']
  %s0 = inlined_call_operand.vmem [shape: f32[8,8,512], index: 0, kind: input, shape index: {}]
  %s1 = inlined_call_operand.vmem [shape: f32[8,8,512], index: 1, kind: input, shape index: {}]
  %s2 = inlined_call_operand.vmem [shape: f32[128,512], index: 2, kind: input, shape index: {}]
  %s3 = inlined_call_operand.vmem [shape: f32[128,512], index: 3, kind: input, shape index: {}]
  %s4 = inlined_call_operand.vmem [shape: f32[8,8,128], index: 4, kind: output, shape index: {}]
  %s5 = sld [smem:[#allocation0]]
  $region40: #{encoder_decoder_forward.6} parent=0
    _
  %s7 = ssub.s32 1, %s5
  %s8 = scalar_select 0, %s7, %s5
  // Predicated region
  $region2: #{encoder_decoder_forward.6} parent=0 // pred_check
    _
  $region3: #{encoder_decoder_forward.6} parent=0 // pred_check_branch
    %10 = sbr.rel (0) target = $region5
  $region4: #{encoder_decoder_forward.6} parent=0 // pred_region
    _
  $region5: #{encoder_decoder_forward.6} parent=0 // pred_fallthru
    _
  // Predicated region
  $region6: #{encoder_decoder_forward.6} parent=0 // pred_check
    _
  $region7: #{encoder_decoder_forward.6} parent=0 // pred_check_branch
    %12 = sbr.rel (0) target = $region9
  $region8: #{encoder_decoder_forward.6} parent=0 // pred_region
    _
  $region9: #{encoder_decoder_forward.6} parent=0 // pred_fallthru
    _
  // Predicated region
  $region10: #{encoder_decoder_forward.6} parent=0 // pred_check
    _
  $region11: #{encoder_decoder_forward.6} parent=0 // pred_check_branch
    %14 = sbr.rel (0) target = $region13
  $region12: #{encoder_decoder_forward.6} parent=0 // pred_region
    _
  $region13: #{encoder_decoder_forward.6} parent=0 // pred_fallthru
    _
  // Predicated region
  $region14: #{encoder_decoder_forward.6} parent=0 // pred_check
    _
  $region15: #{encoder_decoder_forward.6} parent=0 // pred_check_branch
    %16 = sbr.rel (0) target = $region17
  $region16: #{encoder_decoder_forward.6} parent=0 // pred_region
    _
  $region17: #{encoder_decoder_forward.6} parent=0 // pred_fallthru
    _
  %17 = vst [vmem:[#allocation2] sm:$0xff] 0.0
  %18 = vst [vmem:[#allocation3] sm:$0xff] 0.0
  %v19 = vld [vmem:[%s2] sm:$0xff]
  %v20 = vld [vmem:[%s2 + $0x8] sm:$0xff]
  %v21 = vld [vmem:[%s2 + $0x10] sm:$0xff]
  %v22 = vld [vmem:[%s2 + $0x18] sm:$0xff]
  %v23 = vld [vmem:[%s2 + $0x20] sm:$0xff]
  %v24 = vld [vmem:[%s2 + $0x28] sm:$0xff]
  %v25 = vld [vmem:[%s2 + $0x30] sm:$0xff]
  %v26 = vld [vmem:[%s2 + $0x38] sm:$0xff]
  %v27 = vld [vmem:[%s2 + $0x40] sm:$0xff]
  %v28 = vld [vmem:[%s2 + $0x48] sm:$0xff]
  %v29 = vld [vmem:[%s2 + $0x50] sm:$0xff]
  %v30 = vld [vmem:[%s2 + $0x58] sm:$0xff]
  %v31 = vld [vmem:[%s2 + $0x60] sm:$0xff]
  %v32 = vld [vmem:[%s2 + $0x68] sm:$0xff]
  %v33 = vld [vmem:[%s2 + $0x70] sm:$0xff]
  %v34 = vld [vmem:[%s2 + $0x78] sm:$0xff]
  %v35 = vld [vmem:[%s2 + $0x80] sm:$0xff]
  %v36 = vld [vmem:[%s2 + $0x88] sm:$0xff]
  %v37 = vld [vmem:[%s2 + $0x90] sm:$0xff]
  %v38 = vld [vmem:[%s2 + $0x98] sm:$0xff]
  %v39 = vld [vmem:[%s2 + $0xa0] sm:$0xff]
  %v40 = vld [vmem:[%s2 + $0xa8] sm:$0xff]
  %v41 = vld [vmem:[%s2 + $0xb0] sm:$0xff]
  %v42 = vld [vmem:[%s2 + $0xb8] sm:$0xff]
  %v43 = vld [vmem:[%s2 + $0xc0] sm:$0xff]
  %v44 = vld [vmem:[%s2 + $0xc8] sm:$0xff]
  %v45 = vld [vmem:[%s2 + $0xd0] sm:$0xff]
  %v46 = vld [vmem:[%s2 + $0xd8] sm:$0xff]
  %v47 = vld [vmem:[%s2 + $0xe0] sm:$0xff]
  %v48 = vld [vmem:[%s2 + $0xe8] sm:$0xff]
  %v49 = vld [vmem:[%s2 + $0xf0] sm:$0xff]
  %v50 = vld [vmem:[%s2 + $0xf8] sm:$0xff]
  %v51 = vld [vmem:[%s2 + $0x100] sm:$0xff]
  %v52 = vld [vmem:[%s2 + $0x108] sm:$0xff]
  %v53 = vld [vmem:[%s2 + $0x110] sm:$0xff]
  %v54 = vld [vmem:[%s2 + $0x118] sm:$0xff]
  %v55 = vld [vmem:[%s2 + $0x120] sm:$0xff]
  %v56 = vld [vmem:[%s2 + $0x128] sm:$0xff]
  %v57 = vld [vmem:[%s2 + $0x130] sm:$0xff]
  %v58 = vld [vmem:[%s2 + $0x138] sm:$0xff]
  %v59 = vld [vmem:[%s2 + $0x140] sm:$0xff]
  %v60 = vld [vmem:[%s2 + $0x148] sm:$0xff]
  %v61 = vld [vmem:[%s2 + $0x150] sm:$0xff]
  %v62 = vld [vmem:[%s2 + $0x158] sm:$0xff]
  %v63 = vld [vmem:[%s2 + $0x160] sm:$0xff]
  %v64 = vld [vmem:[%s2 + $0x168] sm:$0xff]
  %v65 = vld [vmem:[%s2 + $0x170] sm:$0xff]
  %v66 = vld [vmem:[%s2 + $0x178] sm:$0xff]
  %v67 = vld [vmem:[%s2 + $0x180] sm:$0xff]
  %v68 = vld [vmem:[%s2 + $0x188] sm:$0xff]
  %v69 = vld [vmem:[%s2 + $0x190] sm:$0xff]
  %v70 = vld [vmem:[%s2 + $0x198] sm:$0xff]
  %v71 = vld [vmem:[%s2 + $0x1a0] sm:$0xff]
  %v72 = vld [vmem:[%s2 + $0x1a8] sm:$0xff]
  %v73 = vld [vmem:[%s2 + $0x1b0] sm:$0xff]
  %v74 = vld [vmem:[%s2 + $0x1b8] sm:$0xff]
  %v75 = vld [vmem:[%s2 + $0x1c0] sm:$0xff]
  %v76 = vld [vmem:[%s2 + $0x1c8] sm:$0xff]
  %v77 = vld [vmem:[%s2 + $0x1d0] sm:$0xff]
  %v78 = vld [vmem:[%s2 + $0x1d8] sm:$0xff]
  %v79 = vld [vmem:[%s2 + $0x1e0] sm:$0xff]
  %v80 = vld [vmem:[%s2 + $0x1e8] sm:$0xff]
  %v81 = vld [vmem:[%s2 + $0x1f0] sm:$0xff]
  %v82 = vld [vmem:[%s2 + $0x1f8] sm:$0xff]
  %v83 = vld [vmem:[%s3] sm:$0xff]
  %v84 = vld [vmem:[%s3 + $0x8] sm:$0xff]
  %v85 = vld [vmem:[%s3 + $0x10] sm:$0xff]
  %v86 = vld [vmem:[%s3 + $0x18] sm:$0xff]
  %v87 = vld [vmem:[%s3 + $0x20] sm:$0xff]
  %v88 = vld [vmem:[%s3 + $0x28] sm:$0xff]
  %v89 = vld [vmem:[%s3 + $0x30] sm:$0xff]
  %v90 = vld [vmem:[%s3 + $0x38] sm:$0xff]
  %v91 = vld [vmem:[%s3 + $0x40] sm:$0xff]
  %v92 = vld [vmem:[%s3 + $0x48] sm:$0xff]
  %v93 = vld [vmem:[%s3 + $0x50] sm:$0xff]
  %v94 = vld [vmem:[%s3 + $0x58] sm:$0xff]
  %v95 = vld [vmem:[%s3 + $0x60] sm:$0xff]
  %v96 = vld [vmem:[%s3 + $0x68] sm:$0xff]
  %v97 = vld [vmem:[%s3 + $0x70] sm:$0xff]
  %v98 = vld [vmem:[%s3 + $0x78] sm:$0xff]
  %v99 = vld [vmem:[%s3 + $0x80] sm:$0xff]
  %v100 = vld [vmem:[%s3 + $0x88] sm:$0xff]
  %v101 = vld [vmem:[%s3 + $0x90] sm:$0xff]
  %v102 = vld [vmem:[%s3 + $0x98] sm:$0xff]
  %v103 = vld [vmem:[%s3 + $0xa0] sm:$0xff]
  %v104 = vld [vmem:[%s3 + $0xa8] sm:$0xff]
  %v105 = vld [vmem:[%s3 + $0xb0] sm:$0xff]
  %v106 = vld [vmem:[%s3 + $0xb8] sm:$0xff]
  %v107 = vld [vmem:[%s3 + $0xc0] sm:$0xff]
  %v108 = vld [vmem:[%s3 + $0xc8] sm:$0xff]
  %v109 = vld [vmem:[%s3 + $0xd0] sm:$0xff]
  %v110 = vld [vmem:[%s3 + $0xd8] sm:$0xff]
  %v111 = vld [vmem:[%s3 + $0xe0] sm:$0xff]
  %v112 = vld [vmem:[%s3 + $0xe8] sm:$0xff]
  %v113 = vld [vmem:[%s3 + $0xf0] sm:$0xff]
  %v114 = vld [vmem:[%s3 + $0xf8] sm:$0xff]
  %v115 = vld [vmem:[%s3 + $0x100] sm:$0xff]
  %v116 = vld [vmem:[%s3 + $0x108] sm:$0xff]
  %v117 = vld [vmem:[%s3 + $0x110] sm:$0xff]
  %v118 = vld [vmem:[%s3 + $0x118] sm:$0xff]
  %v119 = vld [vmem:[%s3 + $0x120] sm:$0xff]
  %v120 = vld [vmem:[%s3 + $0x128] sm:$0xff]
  %v121 = vld [vmem:[%s3 + $0x130] sm:$0xff]
  %v122 = vld [vmem:[%s3 + $0x138] sm:$0xff]
  %v123 = vld [vmem:[%s3 + $0x140] sm:$0xff]
  %v124 = vld [vmem:[%s3 + $0x148] sm:$0xff]
  %v125 = vld [vmem:[%s3 + $0x150] sm:$0xff]
  %v126 = vld [vmem:[%s3 + $0x158] sm:$0xff]
  %v127 = vld [vmem:[%s3 + $0x160] sm:$0xff]
  %v128 = vld [vmem:[%s3 + $0x168] sm:$0xff]
  %v129 = vld [vmem:[%s3 + $0x170] sm:$0xff]
  %v130 = vld [vmem:[%s3 + $0x178] sm:$0xff]
  %v131 = vld [vmem:[%s3 + $0x180] sm:$0xff]
  %v132 = vld [vmem:[%s3 + $0x188] sm:$0xff]
  %v133 = vld [vmem:[%s3 + $0x190] sm:$0xff]
  %v134 = vld [vmem:[%s3 + $0x198] sm:$0xff]
  %v135 = vld [vmem:[%s3 + $0x1a0] sm:$0xff]
  %v136 = vld [vmem:[%s3 + $0x1a8] sm:$0xff]
  %v137 = vld [vmem:[%s3 + $0x1b0] sm:$0xff]
  %v138 = vld [vmem:[%s3 + $0x1b8] sm:$0xff]
  %v139 = vld [vmem:[%s3 + $0x1c0] sm:$0xff]
  %v140 = vld [vmem:[%s3 + $0x1c8] sm:$0xff]
  %v141 = vld [vmem:[%s3 + $0x1d0] sm:$0xff]
  %v142 = vld [vmem:[%s3 + $0x1d8] sm:$0xff]
  %v143 = vld [vmem:[%s3 + $0x1e0] sm:$0xff]
  %v144 = vld [vmem:[%s3 + $0x1e8] sm:$0xff]
  %v145 = vld [vmem:[%s3 + $0x1f0] sm:$0xff]
  %v146 = vld [vmem:[%s3 + $0x1f8] sm:$0xff]
  loop: start=0, step=1, limit=8
  $region18: #{encoder_decoder_forward.6} parent=0 // loop_pre_header
    _
  $region19: #{encoder_decoder_forward.6} parent=0 // loop_header
    %s148 = sphi 0, %s152
    %p149 = scmp.ge.s32.totalorder %s148, 8
  $region20: #{encoder_decoder_forward.6} parent=0 // loop_header_branch
    %151 = sbr.rel (%p149) target = $region24
  $region21: #{encoder_decoder_forward.6} parent=0 // loop_body
    %s153 = smul.u32 %s148, 4
    %s154 = smul.addr %s153, 8
    %s155 = scalar_lea.vmem %s0, %s154
    %v156 = vld [vmem:[%s155] sm:$0xff]
    %v157 = vld [vmem:[%s155 + $0x8] sm:$0xff]
    %v158 = vld [vmem:[%s155 + $0x10] sm:$0xff]
    %v159 = vld [vmem:[%s155 + $0x18] sm:$0xff]
    %v160 = vld [vmem:[#allocation2] sm:$0xff]
    %v161 = vld [vmem:[#allocation3] sm:$0xff]
    %162 = vmatprep.subr.mxu0 %v80
    %163 = vmatpush1.msra.mxu0 %v79
    %164 = vmatprep.subr.mxu0 %v76
    %165 = vmatpush1.msra.mxu0 %v75
    %166 = vmatprep.subr.mxu0 %v72
    %167 = vmatpush1.msra.mxu0 %v71
    %168 = vmatprep.subr.mxu0 %v68
    %169 = vmatpush1.msra.mxu0 %v67
    %170 = vmatprep.subr.mxu0 %v64
    %171 = vmatpush1.msra.mxu0 %v63
    %172 = vmatprep.subr.mxu0 %v60
    %173 = vmatpush1.msra.mxu0 %v59
    %174 = vmatprep.subr.mxu0 %v56
    %175 = vmatpush1.msra.mxu0 %v55
    %176 = vmatprep.subr.mxu0 %v52
    %177 = vmatpush1.msra.mxu0 %v51
    %178 = vmatprep.subr.mxu0 %v48
    %179 = vmatpush1.msra.mxu0 %v47
    %180 = vmatprep.subr.mxu0 %v44
    %181 = vmatpush1.msra.mxu0 %v43
    %182 = vmatprep.subr.mxu0 %v40
    %183 = vmatpush1.msra.mxu0 %v39
    %184 = vmatprep.subr.mxu0 %v36
    %185 = vmatpush1.msra.mxu0 %v35
    %186 = vmatprep.subr.mxu0 %v32
    %187 = vmatpush1.msra.mxu0 %v31
    %188 = vmatprep.subr.mxu0 %v28
    %189 = vmatpush1.msra.mxu0 %v27
    %190 = vmatprep.subr.mxu0 %v24
    %191 = vmatpush1.msra.mxu0 %v23
    %192 = vmatprep.subr.mxu0 %v20
    %193 = vmatpush1.msra.mxu0 %v19
    %194 = vmatprep.subr.mxu0 0.0
    %195 = vmatpush2.msra.mxu0 0.0
    %196 = vmatprep.subr.mxu0 0.0
    %197 = vmatpush2.msra.mxu0 0.0
    %198 = vmatprep.subr.mxu0 0.0
    %199 = vmatpush2.msra.mxu0 0.0
    %200 = vmatprep.subr.mxu0 0.0
    %201 = vmatpush2.msra.mxu0 0.0
    %202 = vmatprep.subr.mxu0 0.0
    %203 = vmatpush2.msra.mxu0 0.0
    %204 = vmatprep.subr.mxu0 0.0
    %205 = vmatpush2.msra.mxu0 0.0
    %206 = vmatprep.subr.mxu0 0.0
    %207 = vmatpush2.msra.mxu0 0.0
    %208 = vmatprep.subr.mxu0 0.0
    %209 = vmatpush2.msra.mxu0 0.0
    %210 = vmatprep.subr.mxu0 0.0
    %211 = vmatpush2.msra.mxu0 0.0
    %212 = vmatprep.subr.mxu0 0.0
    %213 = vmatpush2.msra.mxu0 0.0
    %214 = vmatprep.subr.mxu0 0.0
    %215 = vmatpush2.msra.mxu0 0.0
    %216 = vmatprep.subr.mxu0 0.0
    %217 = vmatpush2.msra.mxu0 0.0
    %218 = vmatprep.subr.mxu0 0.0
    %219 = vmatpush2.msra.mxu0 0.0
    %220 = vmatprep.subr.mxu0 0.0
    %221 = vmatpush2.msra.mxu0 0.0
    %222 = vmatprep.subr.mxu0 0.0
    %223 = vmatpush2.msra.mxu0 0.0
    %224 = vmatprep.subr.mxu0 0.0
    %225 = vmatpush2.msra.mxu0 0.0
    %226 = vmatprep.mubr.f32.mxu0 0.0
    %227 = vmatmul.mubr.f32.gmra.mxu0 %v160
    %v228 = vpop.f32.mrf.mxu0
    %v229 = vadd.f32 0.0, %v228
    %v230 = vpop.f32.mrf.mxu0
    %v231 = vadd.f32 0.0, %v230
    %232 = vdwg.mxu0
    %233 = vmatprep.subr.mxu0 %v82
    %234 = vmatpush1.msra.mxu0 %v81
    %235 = vmatprep.subr.mxu0 %v78
    %236 = vmatpush1.msra.mxu0 %v77
    %237 = vmatprep.subr.mxu0 %v74
    %238 = vmatpush1.msra.mxu0 %v73
    %239 = vmatprep.subr.mxu0 %v70
    %240 = vmatpush1.msra.mxu0 %v69
    %241 = vmatprep.subr.mxu0 %v66
    %242 = vmatpush1.msra.mxu0 %v65
    %243 = vmatprep.subr.mxu0 %v62
    %244 = vmatpush1.msra.mxu0 %v61
    %245 = vmatprep.subr.mxu0 %v58
    %246 = vmatpush1.msra.mxu0 %v57
    %247 = vmatprep.subr.mxu0 %v54
    %248 = vmatpush1.msra.mxu0 %v53
    %249 = vmatprep.subr.mxu0 %v50
    %250 = vmatpush1.msra.mxu0 %v49
    %251 = vmatprep.subr.mxu0 %v46
    %252 = vmatpush1.msra.mxu0 %v45
    %253 = vmatprep.subr.mxu0 %v42
    %254 = vmatpush1.msra.mxu0 %v41
    %255 = vmatprep.subr.mxu0 %v38
    %256 = vmatpush1.msra.mxu0 %v37
    %257 = vmatprep.subr.mxu0 %v34
    %258 = vmatpush1.msra.mxu0 %v33
    %259 = vmatprep.subr.mxu0 %v30
    %260 = vmatpush1.msra.mxu0 %v29
    %261 = vmatprep.subr.mxu0 %v26
    %262 = vmatpush1.msra.mxu0 %v25
    %263 = vmatprep.subr.mxu0 %v22
    %264 = vmatpush1.msra.mxu0 %v21
    %265 = vmatprep.subr.mxu0 0.0
    %266 = vmatpush2.msra.mxu0 0.0
    %267 = vmatprep.subr.mxu0 0.0
    %268 = vmatpush2.msra.mxu0 0.0
    %269 = vmatprep.subr.mxu0 0.0
    %270 = vmatpush2.msra.mxu0 0.0
    %271 = vmatprep.subr.mxu0 0.0
    %272 = vmatpush2.msra.mxu0 0.0
    %273 = vmatprep.subr.mxu0 0.0
    %274 = vmatpush2.msra.mxu0 0.0
    %275 = vmatprep.subr.mxu0 0.0
    %276 = vmatpush2.msra.mxu0 0.0
    %277 = vmatprep.subr.mxu0 0.0
    %278 = vmatpush2.msra.mxu0 0.0
    %279 = vmatprep.subr.mxu0 0.0
    %280 = vmatpush2.msra.mxu0 0.0
    %281 = vmatprep.subr.mxu0 0.0
    %282 = vmatpush2.msra.mxu0 0.0
    %283 = vmatprep.subr.mxu0 0.0
    %284 = vmatpush2.msra.mxu0 0.0
    %285 = vmatprep.subr.mxu0 0.0
    %286 = vmatpush2.msra.mxu0 0.0
    %287 = vmatprep.subr.mxu0 0.0
    %288 = vmatpush2.msra.mxu0 0.0
    %289 = vmatprep.subr.mxu0 0.0
    %290 = vmatpush2.msra.mxu0 0.0
    %291 = vmatprep.subr.mxu0 0.0
    %292 = vmatpush2.msra.mxu0 0.0
    %293 = vmatprep.subr.mxu0 0.0
    %294 = vmatpush2.msra.mxu0 0.0
    %295 = vmatprep.subr.mxu0 0.0
    %296 = vmatpush2.msra.mxu0 0.0
    %297 = vmatprep.mubr.f32.mxu0 0.0
    %298 = vmatmul.mubr.f32.gmra.mxu0 %v160
    %v299 = vpop.f32.mrf.mxu0
    %v300 = vadd.f32 0.0, %v299
    %v301 = vpop.f32.mrf.mxu0
    %v302 = vadd.f32 0.0, %v301
    %303 = vdwg.mxu0
    %v304 = vadd.f32 %v156, %v229
    %v305 = vadd.f32 %v157, %v231
    %v306 = vadd.f32 %v158, %v300
    %v307 = vadd.f32 %v159, %v302
    %v308 = vxor.u32 %v304, 2147483648
    %v309 = vmul.f32 %v308, 1.442695
    %v310 = vpow.pop %v309
    %v311 = vadd.f32 %v310, 1.0
    %v312 = vrcp.pop %v311
    %v313 = vmul.f32 1.0, %v312
    %v314 = vxor.u32 %v305, 2147483648
    %v315 = vmul.f32 %v314, 1.442695
    %v316 = vpow.pop %v315
    %v317 = vadd.f32 %v316, 1.0
    %v318 = vrcp.pop %v317
    %v319 = vmul.f32 1.0, %v318
    %v320 = vtanh.pop %v306
    %v321 = vxor.u32 %v307, 2147483648
    %v322 = vmul.f32 %v321, 1.442695
    %v323 = vpow.pop %v322
    %v324 = vadd.f32 %v323, 1.0
    %v325 = vrcp.pop %v324
    %v326 = vmul.f32 1.0, %v325
    %v327 = vmul.f32 %v319, %v161
    %v328 = vmul.f32 %v313, %v320
    %v329 = vadd.f32 %v327, %v328
    %v330 = vtanh.pop %v329
    %v331 = vmul.f32 %v326, %v330
    %332 = vst [vmem:[#allocation2] sm:$0xff] %v331
    %333 = vst [vmem:[#allocation3] sm:$0xff] %v329
  $region22: #{encoder_decoder_forward.6} parent=0 // loop_footer
    %s152 = sadd.s32 1, %s148
  $region23: #{encoder_decoder_forward.6} parent=0 // loop_footer_branch
    %147 = sbr.rel target = $region19
  $region24: #{encoder_decoder_forward.6} parent=0 // loop_exit
    _
  loop: start=0, step=1, limit=8
  $region25: #{encoder_decoder_forward.6} parent=0 // loop_pre_header
    _
  $region26: #{encoder_decoder_forward.6} parent=0 // loop_header
    %s335 = sphi 0, %s339
    %p336 = scmp.ge.s32.totalorder %s335, 8
  $region27: #{encoder_decoder_forward.6} parent=0 // loop_header_branch
    %338 = sbr.rel (%p336) target = $region31
  $region28: #{encoder_decoder_forward.6} parent=0 // loop_body
    %s340 = smul.u32 %s335, 4
    %s341 = smul.addr %s340, 8
    %s342 = scalar_lea.vmem %s1, %s341
    %v343 = vld [vmem:[%s342] sm:$0xff]
    %v344 = vld [vmem:[%s342 + $0x8] sm:$0xff]
    %v345 = vld [vmem:[%s342 + $0x10] sm:$0xff]
    %v346 = vld [vmem:[%s342 + $0x18] sm:$0xff]
    %v347 = vld [vmem:[#allocation2] sm:$0xff]
    %v348 = vld [vmem:[#allocation3] sm:$0xff]
    %349 = vmatprep.subr.mxu0 %v144
    %350 = vmatpush1.msra.mxu0 %v143
    %351 = vmatprep.subr.mxu0 %v140
    %352 = vmatpush1.msra.mxu0 %v139
    %353 = vmatprep.subr.mxu0 %v136
    %354 = vmatpush1.msra.mxu0 %v135
    %355 = vmatprep.subr.mxu0 %v132
    %356 = vmatpush1.msra.mxu0 %v131
    %357 = vmatprep.subr.mxu0 %v128
    %358 = vmatpush1.msra.mxu0 %v127
    %359 = vmatprep.subr.mxu0 %v124
    %360 = vmatpush1.msra.mxu0 %v123
    %361 = vmatprep.subr.mxu0 %v120
    %362 = vmatpush1.msra.mxu0 %v119
    %363 = vmatprep.subr.mxu0 %v116
    %364 = vmatpush1.msra.mxu0 %v115
    %365 = vmatprep.subr.mxu0 %v112
    %366 = vmatpush1.msra.mxu0 %v111
    %367 = vmatprep.subr.mxu0 %v108
    %368 = vmatpush1.msra.mxu0 %v107
    %369 = vmatprep.subr.mxu0 %v104
    %370 = vmatpush1.msra.mxu0 %v103
    %371 = vmatprep.subr.mxu0 %v100
    %372 = vmatpush1.msra.mxu0 %v99
    %373 = vmatprep.subr.mxu0 %v96
    %374 = vmatpush1.msra.mxu0 %v95
    %375 = vmatprep.subr.mxu0 %v92
    %376 = vmatpush1.msra.mxu0 %v91
    %377 = vmatprep.subr.mxu0 %v88
    %378 = vmatpush1.msra.mxu0 %v87
    %379 = vmatprep.subr.mxu0 %v84
    %380 = vmatpush1.msra.mxu0 %v83
    %381 = vmatprep.subr.mxu0 0.0
    %382 = vmatpush2.msra.mxu0 0.0
    %383 = vmatprep.subr.mxu0 0.0
    %384 = vmatpush2.msra.mxu0 0.0
    %385 = vmatprep.subr.mxu0 0.0
    %386 = vmatpush2.msra.mxu0 0.0
    %387 = vmatprep.subr.mxu0 0.0
    %388 = vmatpush2.msra.mxu0 0.0
    %389 = vmatprep.subr.mxu0 0.0
    %390 = vmatpush2.msra.mxu0 0.0
    %391 = vmatprep.subr.mxu0 0.0
    %392 = vmatpush2.msra.mxu0 0.0
    %393 = vmatprep.subr.mxu0 0.0
    %394 = vmatpush2.msra.mxu0 0.0
    %395 = vmatprep.subr.mxu0 0.0
    %396 = vmatpush2.msra.mxu0 0.0
    %397 = vmatprep.subr.mxu0 0.0
    %398 = vmatpush2.msra.mxu0 0.0
    %399 = vmatprep.subr.mxu0 0.0
    %400 = vmatpush2.msra.mxu0 0.0
    %401 = vmatprep.subr.mxu0 0.0
    %402 = vmatpush2.msra.mxu0 0.0
    %403 = vmatprep.subr.mxu0 0.0
    %404 = vmatpush2.msra.mxu0 0.0
    %405 = vmatprep.subr.mxu0 0.0
    %406 = vmatpush2.msra.mxu0 0.0
    %407 = vmatprep.subr.mxu0 0.0
    %408 = vmatpush2.msra.mxu0 0.0
    %409 = vmatprep.subr.mxu0 0.0
    %410 = vmatpush2.msra.mxu0 0.0
    %411 = vmatprep.subr.mxu0 0.0
    %412 = vmatpush2.msra.mxu0 0.0
    %413 = vmatprep.mubr.f32.mxu0 0.0
    %414 = vmatmul.mubr.f32.gmra.mxu0 %v347
    %v415 = vpop.f32.mrf.mxu0
    %v416 = vadd.f32 0.0, %v415
    %v417 = vpop.f32.mrf.mxu0
    %v418 = vadd.f32 0.0, %v417
    %419 = vdwg.mxu0
    %420 = vmatprep.subr.mxu0 %v146
    %421 = vmatpush1.msra.mxu0 %v145
    %422 = vmatprep.subr.mxu0 %v142
    %423 = vmatpush1.msra.mxu0 %v141
    %424 = vmatprep.subr.mxu0 %v138
    %425 = vmatpush1.msra.mxu0 %v137
    %426 = vmatprep.subr.mxu0 %v134
    %427 = vmatpush1.msra.mxu0 %v133
    %428 = vmatprep.subr.mxu0 %v130
    %429 = vmatpush1.msra.mxu0 %v129
    %430 = vmatprep.subr.mxu0 %v126
    %431 = vmatpush1.msra.mxu0 %v125
    %432 = vmatprep.subr.mxu0 %v122
    %433 = vmatpush1.msra.mxu0 %v121
    %434 = vmatprep.subr.mxu0 %v118
    %435 = vmatpush1.msra.mxu0 %v117
    %436 = vmatprep.subr.mxu0 %v114
    %437 = vmatpush1.msra.mxu0 %v113
    %438 = vmatprep.subr.mxu0 %v110
    %439 = vmatpush1.msra.mxu0 %v109
    %440 = vmatprep.subr.mxu0 %v106
    %441 = vmatpush1.msra.mxu0 %v105
    %442 = vmatprep.subr.mxu0 %v102
    %443 = vmatpush1.msra.mxu0 %v101
    %444 = vmatprep.subr.mxu0 %v98
    %445 = vmatpush1.msra.mxu0 %v97
    %446 = vmatprep.subr.mxu0 %v94
    %447 = vmatpush1.msra.mxu0 %v93
    %448 = vmatprep.subr.mxu0 %v90
    %449 = vmatpush1.msra.mxu0 %v89
    %450 = vmatprep.subr.mxu0 %v86
    %451 = vmatpush1.msra.mxu0 %v85
    %452 = vmatprep.subr.mxu0 0.0
    %453 = vmatpush2.msra.mxu0 0.0
    %454 = vmatprep.subr.mxu0 0.0
    %455 = vmatpush2.msra.mxu0 0.0
    %456 = vmatprep.subr.mxu0 0.0
    %457 = vmatpush2.msra.mxu0 0.0
    %458 = vmatprep.subr.mxu0 0.0
    %459 = vmatpush2.msra.mxu0 0.0
    %460 = vmatprep.subr.mxu0 0.0
    %461 = vmatpush2.msra.mxu0 0.0
    %462 = vmatprep.subr.mxu0 0.0
    %463 = vmatpush2.msra.mxu0 0.0
    %464 = vmatprep.subr.mxu0 0.0
    %465 = vmatpush2.msra.mxu0 0.0
    %466 = vmatprep.subr.mxu0 0.0
    %467 = vmatpush2.msra.mxu0 0.0
    %468 = vmatprep.subr.mxu0 0.0
    %469 = vmatpush2.msra.mxu0 0.0
    %470 = vmatprep.subr.mxu0 0.0
    %471 = vmatpush2.msra.mxu0 0.0
    %472 = vmatprep.subr.mxu0 0.0
    %473 = vmatpush2.msra.mxu0 0.0
    %474 = vmatprep.subr.mxu0 0.0
    %475 = vmatpush2.msra.mxu0 0.0
    %476 = vmatprep.subr.mxu0 0.0
    %477 = vmatpush2.msra.mxu0 0.0
    %478 = vmatprep.subr.mxu0 0.0
    %479 = vmatpush2.msra.mxu0 0.0
    %480 = vmatprep.subr.mxu0 0.0
    %481 = vmatpush2.msra.mxu0 0.0
    %482 = vmatprep.subr.mxu0 0.0
    %483 = vmatpush2.msra.mxu0 0.0
    %484 = vmatprep.mubr.f32.mxu0 0.0
    %485 = vmatmul.mubr.f32.gmra.mxu0 %v347
    %v486 = vpop.f32.mrf.mxu0
    %v487 = vadd.f32 0.0, %v486
    %v488 = vpop.f32.mrf.mxu0
    %v489 = vadd.f32 0.0, %v488
    %490 = vdwg.mxu0
    %v491 = vadd.f32 %v343, %v416
    %v492 = vadd.f32 %v344, %v418
    %v493 = vadd.f32 %v345, %v487
    %v494 = vadd.f32 %v346, %v489
    %v495 = vxor.u32 %v491, 2147483648
    %v496 = vmul.f32 %v495, 1.442695
    %v497 = vpow.pop %v496
    %v498 = vadd.f32 %v497, 1.0
    %v499 = vrcp.pop %v498
    %v500 = vmul.f32 1.0, %v499
    %v501 = vxor.u32 %v492, 2147483648
    %v502 = vmul.f32 %v501, 1.442695
    %v503 = vpow.pop %v502
    %v504 = vadd.f32 %v503, 1.0
    %v505 = vrcp.pop %v504
    %v506 = vmul.f32 1.0, %v505
    %v507 = vtanh.pop %v493
    %v508 = vxor.u32 %v494, 2147483648
    %v509 = vmul.f32 %v508, 1.442695
    %v510 = vpow.pop %v509
    %v511 = vadd.f32 %v510, 1.0
    %v512 = vrcp.pop %v511
    %v513 = vmul.f32 1.0, %v512
    %v514 = vmul.f32 %v506, %v348
    %v515 = vmul.f32 %v500, %v507
    %v516 = vadd.f32 %v514, %v515
    %v517 = vtanh.pop %v516
    %v518 = vmul.f32 %v513, %v517
    %519 = vst [vmem:[#allocation2] sm:$0xff] %v518
    %520 = vst [vmem:[#allocation3] sm:$0xff] %v516
    %s521 = smul.u32 %s335, 8
    %s522 = scalar_lea.vmem %s4, %s521
    %523 = vst [vmem:[%s522] sm:$0xff] %v518
  $region29: #{encoder_decoder_forward.6} parent=0 // loop_footer
    %s339 = sadd.s32 1, %s335
  $region30: #{encoder_decoder_forward.6} parent=0 // loop_footer_branch
    %334 = sbr.rel target = $region26
  $region31: #{encoder_decoder_forward.6} parent=0 // loop_exit
    _
  // Predicated region
  $region32: #{encoder_decoder_forward.6} parent=0 // pred_check
    _
  $region33: #{encoder_decoder_forward.6} parent=0 // pred_check_branch
    %525 = sbr.rel (0) target = $region35
  $region34: #{encoder_decoder_forward.6} parent=0 // pred_region
    _
  $region35: #{encoder_decoder_forward.6} parent=0 // pred_fallthru
    _
  // Predicated region
  $region36: #{encoder_decoder_forward.6} parent=0 // pred_check
    _
  $region37: #{encoder_decoder_forward.6} parent=0 // pred_check_branch
    %527 = sbr.rel (0) target = $region39
  $region38: #{encoder_decoder_forward.6} parent=0 // pred_region
    _
  $region39: #{encoder_decoder_forward.6} parent=0 // pred_fallthru
    _

</llo_original>
